<compile_context>
chip_gen: v7x
topology: tpu7x:2x2x1
jax: 0.10.0
libtpu: 0.0.40
codegen_flags: <defaults>
</compile_context>

<pallas_src>
import jax
import jax.numpy as jnp
from jax.experimental import pallas as pl
from jax.experimental.pallas import tpu as pltpu


def _span_repr_kernel(starts_ref, ends_ref, head_emb_ref, ctx_ref, wtab_ref,
                      hs_ref, ctx_start_ref, ctx_end_ref, wemb_ref, shead_ref):
    W, _E = head_emb_ref.shape
    MW, F = wtab_ref.shape
    S = starts_ref.shape[0]                # span tile size

    starts = starts_ref[...]               # (S, 1) int32
    ends = ends_ref[...]                    # (S, 1) int32
    ctx = ctx_ref[...]                      # (W, C) f32

    width = 1 + ends - starts               # (S, 1)   (precondition: >= 1)
    width_idx = jnp.minimum(width - 1, MW - 1)

    iota_w = jax.lax.broadcasted_iota(jnp.int32, (S, W), 1)   # word ids

    # --- context_outputs[span_starts] / [span_ends] via one-hot matmuls (exact) ---
    oh_start = (starts == iota_w).astype(jnp.float32)          # (S, W)
    oh_end = (ends == iota_w).astype(jnp.float32)              # (S, W)
    ctx_start_ref[...] = jnp.dot(oh_start, ctx,
                                 preferred_element_type=jnp.float32)
    ctx_end_ref[...] = jnp.dot(oh_end, ctx,
                               preferred_element_type=jnp.float32)

    # --- span width embedding: MW-way select-sum on the VPU (MW, F tiny) ---
    wtab = wtab_ref[...]                                        # (MW, F)
    wemb = jnp.zeros((S, F), jnp.float32)
    for k in range(MW):                                         # static unroll, MW small
        sel = (width_idx == k).astype(jnp.float32)              # (S, 1)
        wemb = wemb + sel * wtab[k:k + 1, :]                    # (S,1)*(1,F) -> (S,F)
    wemb_ref[...] = wemb

    # --- attention-weighted head embedding ---
    # softmax over span positions j (scores hs[start+j], mask j < min(width, MW))
    # == softmax over words w in [start, min(end, start + MW - 1)] with score hs[w].
    hs_row = hs_ref[...]                                        # (1, W)
    valid = ((iota_w >= starts) & (iota_w <= ends)
             & (iota_w < starts + MW))                          # (S, W)
    masked = jnp.where(valid, hs_row, -jnp.inf)                 # (S, W)
    m = jnp.max(masked, axis=1, keepdims=True)                  # (S, 1)
    p = jnp.exp(masked - m)                                     # exactly 0 where masked
    denom = jnp.sum(p, axis=1, keepdims=True)                   # (S, 1)
    att = p / denom                                             # word-level attention
    shead_ref[...] = jnp.dot(att, head_emb_ref[...],
                             preferred_element_type=jnp.float32)  # (S, E)


def span_representation(head_emb, context_outputs, span_starts, span_ends,
                        width_emb_table, att_w, att_b, *, span_tile=None):
    S = int(span_starts.shape[0])
    W, C = context_outputs.shape
    E = head_emb.shape[1]
    MW, F = width_emb_table.shape

    head_emb = head_emb.astype(jnp.float32)
    ctx = context_outputs.astype(jnp.float32)
    wtab = width_emb_table.astype(jnp.float32)

    # Attention scores (nn.Linear(C, 1)) computed once here, not per span tile,
    # and laid out lane-major (1, W) so the kernel broadcasts it across spans.
    head_scores = (ctx @ att_w.astype(jnp.float32).reshape(C, 1)
                   + att_b.astype(jnp.float32).reshape(1, 1)).reshape(1, W)

    # --- pick span tile (multiple of 8) ---
    if span_tile is None:
        # budget ~8 MiB for the (span_tile, W) f32 intermediates — conservative
        # enough for v7x's 64 MiB VMEM while still amortizing per-step overhead.
        budget = 8 * 1024 * 1024
        t = max(1, budget // (6 * 4 * max(W, 128)))
        span_tile = max(8, min(512, (t // 8) * 8))
    span_tile = max(8, min(int(span_tile), ((S + 7) // 8) * 8))
    span_tile = ((span_tile + 7) // 8) * 8
    n_tiles = pl.cdiv(S, span_tile)
    S_pad = n_tiles * span_tile

    # pad spans (padded rows: start = end = 0 -> width 1, harmless; sliced off below)
    starts2 = jnp.zeros((S_pad, 1), jnp.int32).at[:S, 0].set(
        span_starts.astype(jnp.int32))
    ends2 = jnp.zeros((S_pad, 1), jnp.int32).at[:S, 0].set(
        span_ends.astype(jnp.int32))

    # rough VMEM budget: resident arrays + double-buffered span-tile I/O +
    # in-kernel (span_tile, W) intermediates + headroom, capped well below the
    # 64 MiB physical VMEM of v7x.
    resident = 4 * (W * C + W * E + W + MW * F)
    tile_io = 2 * 4 * span_tile * (2 + 2 * C + F + E)
    interm = 6 * 4 * span_tile * W
    vmem_limit = int(min(max(2 * resident + tile_io + interm + (4 << 20), 32 << 20),
                         48 << 20))

    span_spec = pl.BlockSpec((span_tile, 1), lambda i: (i, 0))

    def resident_spec(shape):
        return pl.BlockSpec(shape, lambda i: (0, 0))

    outs = pl.pallas_call(
        _span_repr_kernel,
        grid=(n_tiles,),
        in_specs=[
            span_spec,                      # span_starts  (tiled over S)
            span_spec,                      # span_ends    (tiled over S)
            resident_spec((W, E)),          # head_emb     (VMEM-resident)
            resident_spec((W, C)),          # context_outputs
            resident_spec((MW, F)),         # width embedding table
            resident_spec((1, W)),          # head attention scores
        ],
        out_specs=[
            pl.BlockSpec((span_tile, C), lambda i: (i, 0)),   # ctx[starts]
            pl.BlockSpec((span_tile, C), lambda i: (i, 0)),   # ctx[ends]
            pl.BlockSpec((span_tile, F), lambda i: (i, 0)),   # width emb
            pl.BlockSpec((span_tile, E), lambda i: (i, 0)),   # span head emb
        ],
        out_shape=[
            jax.ShapeDtypeStruct((S_pad, C), jnp.float32),
            jax.ShapeDtypeStruct((S_pad, C), jnp.float32),
            jax.ShapeDtypeStruct((S_pad, F), jnp.float32),
            jax.ShapeDtypeStruct((S_pad, E), jnp.float32),
        ],
        compiler_params=pltpu.CompilerParams(
            dimension_semantics=("parallel",),
            vmem_limit_bytes=vmem_limit),
    )(starts2, ends2, head_emb, ctx, wtab, head_scores)

    ctx_start, ctx_end, wemb, shead = outs
    # Lane-dense per-segment outputs; concatenate (and drop span padding) in XLA.
    return jnp.concatenate(
        [ctx_start[:S], ctx_end[:S], wemb[:S], shead[:S]], axis=1)


def _reference(head_emb, ctx, starts, ends, wtab, att_w, att_b, max_span_width):
    W = ctx.shape[0]
    MW = max_span_width
    width = 1 + ends - starts
    wi = jnp.minimum(width - 1, MW - 1)
    wemb = wtab[wi]
    idx = jnp.minimum(starts[:, None] + jnp.arange(MW)[None, :], W - 1)
    text = head_emb[idx]                                   # [S, MW, E]
    hs = ctx @ att_w + att_b                               # [W, 1]
    shs = hs[idx][..., 0]                                  # [S, MW]
    mask = jnp.arange(MW)[None, :] < width[:, None]
    shs = jnp.where(mask, shs, -jnp.inf)
    att = jax.nn.softmax(shs, axis=1)
    shead = jnp.sum(att[:, :, None] * text, axis=1)        # [S, E]
    return jnp.concatenate([ctx[starts], ctx[ends], wemb, shead], axis=1)


if __name__ == "__main__":
    # sizes implied by the module: words W, context emb C, head emb E,
    # feature_size F, max_span_width MW, num spans S
    W, C, E, F, MW, S = 128, 128, 64, 16, 5, 200

    key = jax.random.PRNGKey(0)
    k1, k2, k3, k4, k5, k6, k7 = jax.random.split(key, 7)

    # deterministic parameter init (synthetic; no checkpoint load)
    width_emb_table = 0.02 * jax.random.normal(k1, (MW, F), jnp.float32)
    att_w = 0.1 * jax.random.normal(k2, (C, 1), jnp.float32)   # nn.Linear(C, 1).weight.T
    att_b = 0.1 * jax.random.normal(k3, (1,), jnp.float32)     # nn.Linear(C, 1).bias

    # example inputs
    head_emb = jax.random.normal(k4, (W, E), jnp.float32)
    context_outputs = jax.random.normal(k5, (W, C), jnp.float32)
    span_starts = jax.random.randint(k6, (S,), 0, W, jnp.int32)
    widths = jax.random.randint(k7, (S,), 1, MW + 3, jnp.int32)  # some exceed MW
    span_ends = jnp.minimum(span_starts + widths - 1, W - 1).astype(jnp.int32)

    # span_tile=64 -> S padded to 256, grid of 4 span tiles
    out = span_representation(head_emb, context_outputs, span_starts, span_ends,
                              width_emb_table, att_w, att_b, span_tile=64)
    out = jax.block_until_ready(out)

    ref = _reference(head_emb, context_outputs, span_starts, span_ends,
                     width_emb_table, att_w, att_b, MW)
    assert out.shape == (S, 2 * C + F + E), out.shape
    max_err = float(jnp.max(jnp.abs(out - ref)))
    assert jnp.allclose(out, ref, atol=1e-4, rtol=1e-4), max_err

    print("KERNEL_OK")
</pallas_src>

<mosaic_0001>
module attributes {stable_mosaic.version = 11 : i64} {
  func.func @_span_repr_kernel(%arg0: i32, %arg1: memref<64x1xi32, #tpu.memory_space<vmem>>, %arg2: memref<64x1xi32, #tpu.memory_space<vmem>>, %arg3: memref<128x64xf32, #tpu.memory_space<vmem>>, %arg4: memref<128x128xf32, #tpu.memory_space<vmem>>, %arg5: memref<5x16xf32, #tpu.memory_space<vmem>>, %arg6: memref<1x128xf32, #tpu.memory_space<vmem>>, %arg7: memref<64x128xf32, #tpu.memory_space<vmem>>, %arg8: memref<64x128xf32, #tpu.memory_space<vmem>>, %arg9: memref<64x16xf32, #tpu.memory_space<vmem>>, %arg10: memref<64x64xf32, #tpu.memory_space<vmem>>) attributes {dimension_semantics = [#tpu.dimension_semantics<parallel>], iteration_bounds = array<i64: 4>, scalar_prefetch = 0 : i64, scratch_operands = 0 : i64, tpu.core_type = #tpu.core_type<tc>, window_params = [{transform_indices = @transform_0, window_bounds = array<i64: 64, 1>}, {transform_indices = @transform_1, window_bounds = array<i64: 64, 1>}, {pipeline_mode = #tpu.pipeline_mode<synchronous>, transform_indices = @transform_2, window_bounds = array<i64: 128, 64>}, {pipeline_mode = #tpu.pipeline_mode<synchronous>, transform_indices = @transform_3, window_bounds = array<i64: 128, 128>}, {pipeline_mode = #tpu.pipeline_mode<synchronous>, transform_indices = @transform_4, window_bounds = array<i64: 5, 16>}, {pipeline_mode = #tpu.pipeline_mode<synchronous>, transform_indices = @transform_5, window_bounds = array<i64: 1, 128>}, {transform_indices = @transform_6, window_bounds = array<i64: 64, 128>}, {transform_indices = @transform_7, window_bounds = array<i64: 64, 128>}, {transform_indices = @transform_8, window_bounds = array<i64: 64, 16>}, {transform_indices = @transform_9, window_bounds = array<i64: 64, 64>}]} {
    %c0 = arith.constant 0 : index
    %c0_0 = arith.constant 0 : index
    %0 = vector.load %arg1[%c0, %c0_0] : memref<64x1xi32, #tpu.memory_space<vmem>>, vector<64x1xi32>
    %c0_1 = arith.constant 0 : index
    %c0_2 = arith.constant 0 : index
    %1 = vector.load %arg2[%c0_1, %c0_2] : memref<64x1xi32, #tpu.memory_space<vmem>>, vector<64x1xi32>
    %c0_3 = arith.constant 0 : index
    %c0_4 = arith.constant 0 : index
    %2 = vector.load %arg4[%c0_3, %c0_4] : memref<128x128xf32, #tpu.memory_space<vmem>>, vector<128x128xf32>
    %c1_i32 = arith.constant 1 : i32
    %3 = vector.broadcast %c1_i32 : i32 to vector<64x1xi32>
    %4 = arith.addi %3, %1 : vector<64x1xi32>
    %5 = arith.subi %4, %0 : vector<64x1xi32>
    %c1_i32_5 = arith.constant 1 : i32
    %6 = vector.broadcast %c1_i32_5 : i32 to vector<64x1xi32>
    %7 = arith.subi %5, %6 : vector<64x1xi32>
    %c4_i32 = arith.constant 4 : i32
    %8 = vector.broadcast %c4_i32 : i32 to vector<64x1xi32>
    %9 = arith.minsi %7, %8 : vector<64x1xi32>
    %10 = tpu.iota {dimensions = array<i32: 1>} : vector<64x128xi32>
    %11 = vector.broadcast %0 : vector<64x1xi32> to vector<64x128xi32>
    %12 = arith.cmpi eq, %11, %10 : vector<64x128xi32>
    %13 = arith.extui %12 : vector<64x128xi1> to vector<64x128xi32>
    %14 = arith.sitofp %13 : vector<64x128xi32> to vector<64x128xf32>
    %15 = vector.broadcast %1 : vector<64x1xi32> to vector<64x128xi32>
    %16 = arith.cmpi eq, %15, %10 : vector<64x128xi32>
    %17 = arith.extui %16 : vector<64x128xi1> to vector<64x128xi32>
    %18 = arith.sitofp %17 : vector<64x128xi32> to vector<64x128xf32>
    %cst = arith.constant dense<0.000000e+00> : vector<64x128xf32>
    %19 = tpu.matmul %14, %2, %cst {dimension_numbers = #tpu.dot_dimension_numbers<[1], [0], [0], [1], [0, 0, 1, 1], [], []>} : vector<64x128xf32>, vector<128x128xf32>, vector<64x128xf32> -> vector<64x128xf32>
    %c0_6 = arith.constant 0 : index
    %c0_7 = arith.constant 0 : index
    %20 = vector.load %arg7[%c0_6, %c0_7] : memref<64x128xf32, #tpu.memory_space<vmem>>, vector<64x128xf32>
    tpu.vector_store %arg7[%c0_6, %c0_7], %19 {strides = array<i32>} : memref<64x128xf32, #tpu.memory_space<vmem>>, vector<64x128xf32>,
    %cst_8 = arith.constant dense<0.000000e+00> : vector<64x128xf32>
    %21 = tpu.matmul %18, %2, %cst_8 {dimension_numbers = #tpu.dot_dimension_numbers<[1], [0], [0], [1], [0, 0, 1, 1], [], []>} : vector<64x128xf32>, vector<128x128xf32>, vector<64x128xf32> -> vector<64x128xf32>
    %c0_9 = arith.constant 0 : index
    %c0_10 = arith.constant 0 : index
    %22 = vector.load %arg8[%c0_9, %c0_10] : memref<64x128xf32, #tpu.memory_space<vmem>>, vector<64x128xf32>
    tpu.vector_store %arg8[%c0_9, %c0_10], %21 {strides = array<i32>} : memref<64x128xf32, #tpu.memory_space<vmem>>, vector<64x128xf32>,
    %c0_11 = arith.constant 0 : index
    %c0_12 = arith.constant 0 : index
    %23 = vector.load %arg5[%c0_11, %c0_12] : memref<5x16xf32, #tpu.memory_space<vmem>>, vector<5x16xf32>
    %cst_13 = arith.constant 0.000000e+00 : f32
    %24 = vector.broadcast %cst_13 : f32 to vector<64x16xf32>
    %c0_i32 = arith.constant 0 : i32
    %25 = vector.broadcast %c0_i32 : i32 to vector<64x1xi32>
    %26 = arith.cmpi eq, %9, %25 : vector<64x1xi32>
    %27 = arith.extui %26 : vector<64x1xi1> to vector<64x1xi32>
    %28 = arith.sitofp %27 : vector<64x1xi32> to vector<64x1xf32>
    %29 = vector.extract_strided_slice %23 {offsets = [0, 0], sizes = [1, 16], strides = [1, 1]} : vector<5x16xf32> to vector<1x16xf32>
    %30 = vector.broadcast %28 : vector<64x1xf32> to vector<64x16xf32>
    %31 = vector.broadcast %29 : vector<1x16xf32> to vector<64x16xf32>
    %32 = arith.mulf %30, %31 : vector<64x16xf32>
    %33 = arith.addf %24, %32 : vector<64x16xf32>
    %c1_i32_14 = arith.constant 1 : i32
    %34 = vector.broadcast %c1_i32_14 : i32 to vector<64x1xi32>
    %35 = arith.cmpi eq, %9, %34 : vector<64x1xi32>
    %36 = arith.extui %35 : vector<64x1xi1> to vector<64x1xi32>
    %37 = arith.sitofp %36 : vector<64x1xi32> to vector<64x1xf32>
    %38 = vector.extract_strided_slice %23 {offsets = [1, 0], sizes = [1, 16], strides = [1, 1]} : vector<5x16xf32> to vector<1x16xf32>
    %39 = vector.broadcast %37 : vector<64x1xf32> to vector<64x16xf32>
    %40 = vector.broadcast %38 : vector<1x16xf32> to vector<64x16xf32>
    %41 = arith.mulf %39, %40 : vector<64x16xf32>
    %42 = arith.addf %33, %41 : vector<64x16xf32>
    %c2_i32 = arith.constant 2 : i32
    %43 = vector.broadcast %c2_i32 : i32 to vector<64x1xi32>
    %44 = arith.cmpi eq, %9, %43 : vector<64x1xi32>
    %45 = arith.extui %44 : vector<64x1xi1> to vector<64x1xi32>
    %46 = arith.sitofp %45 : vector<64x1xi32> to vector<64x1xf32>
    %47 = vector.extract_strided_slice %23 {offsets = [2, 0], sizes = [1, 16], strides = [1, 1]} : vector<5x16xf32> to vector<1x16xf32>
    %48 = vector.broadcast %46 : vector<64x1xf32> to vector<64x16xf32>
    %49 = vector.broadcast %47 : vector<1x16xf32> to vector<64x16xf32>
    %50 = arith.mulf %48, %49 : vector<64x16xf32>
    %51 = arith.addf %42, %50 : vector<64x16xf32>
    %c3_i32 = arith.constant 3 : i32
    %52 = vector.broadcast %c3_i32 : i32 to vector<64x1xi32>
    %53 = arith.cmpi eq, %9, %52 : vector<64x1xi32>
    %54 = arith.extui %53 : vector<64x1xi1> to vector<64x1xi32>
    %55 = arith.sitofp %54 : vector<64x1xi32> to vector<64x1xf32>
    %56 = vector.extract_strided_slice %23 {offsets = [3, 0], sizes = [1, 16], strides = [1, 1]} : vector<5x16xf32> to vector<1x16xf32>
    %57 = vector.broadcast %55 : vector<64x1xf32> to vector<64x16xf32>
    %58 = vector.broadcast %56 : vector<1x16xf32> to vector<64x16xf32>
    %59 = arith.mulf %57, %58 : vector<64x16xf32>
    %60 = arith.addf %51, %59 : vector<64x16xf32>
    %c4_i32_15 = arith.constant 4 : i32
    %61 = vector.broadcast %c4_i32_15 : i32 to vector<64x1xi32>
    %62 = arith.cmpi eq, %9, %61 : vector<64x1xi32>
    %63 = arith.extui %62 : vector<64x1xi1> to vector<64x1xi32>
    %64 = arith.sitofp %63 : vector<64x1xi32> to vector<64x1xf32>
    %65 = vector.extract_strided_slice %23 {offsets = [4, 0], sizes = [1, 16], strides = [1, 1]} : vector<5x16xf32> to vector<1x16xf32>
    %66 = vector.broadcast %64 : vector<64x1xf32> to vector<64x16xf32>
    %67 = vector.broadcast %65 : vector<1x16xf32> to vector<64x16xf32>
    %68 = arith.mulf %66, %67 : vector<64x16xf32>
    %69 = arith.addf %60, %68 : vector<64x16xf32>
    %c0_16 = arith.constant 0 : index
    %c0_17 = arith.constant 0 : index
    %70 = vector.load %arg9[%c0_16, %c0_17] : memref<64x16xf32, #tpu.memory_space<vmem>>, vector<64x16xf32>
    tpu.vector_store %arg9[%c0_16, %c0_17], %69 {strides = array<i32>} : memref<64x16xf32, #tpu.memory_space<vmem>>, vector<64x16xf32>,
    %c0_18 = arith.constant 0 : index
    %c0_19 = arith.constant 0 : index
    %71 = vector.load %arg6[%c0_18, %c0_19] : memref<1x128xf32, #tpu.memory_space<vmem>>, vector<1x128xf32>
    %72 = vector.broadcast %0 : vector<64x1xi32> to vector<64x128xi32>
    %73 = arith.cmpi sge, %10, %72 : vector<64x128xi32>
    %74 = vector.broadcast %1 : vector<64x1xi32> to vector<64x128xi32>
    %75 = arith.cmpi sle, %10, %74 : vector<64x128xi32>
    %76 = arith.andi %73, %75 : vector<64x128xi1>
    %c5_i32 = arith.constant 5 : i32
    %77 = vector.broadcast %c5_i32 : i32 to vector<64x1xi32>
    %78 = arith.addi %0, %77 : vector<64x1xi32>
    %79 = vector.broadcast %78 : vector<64x1xi32> to vector<64x128xi32>
    %80 = arith.cmpi slt, %10, %79 : vector<64x128xi32>
    %81 = arith.andi %76, %80 : vector<64x128xi1>
    %cst_20 = arith.constant 0xFF800000 : f32
    %82 = vector.shape_cast %71 : vector<1x128xf32> to vector<1x128xf32>
    %83 = vector.broadcast %82 : vector<1x128xf32> to vector<64x128xf32>
    %84 = vector.broadcast %cst_20 : f32 to vector<64x128xf32>
    %85 = arith.select %81, %83, %84 : vector<64x128xi1>, vector<64x128xf32>
    %cst_21 = arith.constant dense<0xFF800000> : vector<64xf32>
    %86 = vector.multi_reduction <maximumf>, %85, %cst_21 [1] : vector<64x128xf32> to vector<64xf32>
    %87 = vector.shape_cast %86 : vector<64xf32> to vector<64x1xf32>
    %88 = vector.broadcast %87 : vector<64x1xf32> to vector<64x128xf32>
    %89 = arith.subf %85, %88 : vector<64x128xf32>
    %90 = math.exp %89 : vector<64x128xf32>
    %cst_22 = arith.constant dense<0.000000e+00> : vector<64xf32>
    %91 = vector.multi_reduction <add>, %90, %cst_22 [1] : vector<64x128xf32> to vector<64xf32>
    %92 = vector.shape_cast %91 : vector<64xf32> to vector<64x1xf32>
    %93 = vector.broadcast %92 : vector<64x1xf32> to vector<64x128xf32>
    %94 = arith.divf %90, %93 : vector<64x128xf32>
    %c0_23 = arith.constant 0 : index
    %c0_24 = arith.constant 0 : index
    %95 = vector.load %arg3[%c0_23, %c0_24] : memref<128x64xf32, #tpu.memory_space<vmem>>, vector<128x64xf32>
    %cst_25 = arith.constant dense<0.000000e+00> : vector<64x64xf32>
    %96 = tpu.matmul %94, %95, %cst_25 {dimension_numbers = #tpu.dot_dimension_numbers<[1], [0], [0], [1], [0, 0, 1, 1], [], []>} : vector<64x128xf32>, vector<128x64xf32>, vector<64x64xf32> -> vector<64x64xf32>
    %c0_26 = arith.constant 0 : index
    %c0_27 = arith.constant 0 : index
    %97 = vector.load %arg10[%c0_26, %c0_27] : memref<64x64xf32, #tpu.memory_space<vmem>>, vector<64x64xf32>
    tpu.vector_store %arg10[%c0_26, %c0_27], %96 {strides = array<i32>} : memref<64x64xf32, #tpu.memory_space<vmem>>, vector<64x64xf32>,
    return
  }
  func.func @transform_0(%arg0: i32) -> (i32, i32) {
    %c0_i32 = arith.constant 0 : i32
    %c0_i32_0 = arith.constant 0 : i32
    return %arg0, %c0_i32 : i32, i32
  }
  func.func @transform_1(%arg0: i32) -> (i32, i32) {
    %c0_i32 = arith.constant 0 : i32
    %c0_i32_0 = arith.constant 0 : i32
    return %arg0, %c0_i32 : i32, i32
  }
  func.func @transform_2(%arg0: i32) -> (i32, i32) {
    %c0_i32 = arith.constant 0 : i32
    %c0_i32_0 = arith.constant 0 : i32
    %c0_i32_1 = arith.constant 0 : i32
    return %c0_i32, %c0_i32_0 : i32, i32
  }
  func.func @transform_3(%arg0: i32) -> (i32, i32) {
    %c0_i32 = arith.constant 0 : i32
    %c0_i32_0 = arith.constant 0 : i32
    %c0_i32_1 = arith.constant 0 : i32
    return %c0_i32, %c0_i32_0 : i32, i32
  }
  func.func @transform_4(%arg0: i32) -> (i32, i32) {
    %c0_i32 = arith.constant 0 : i32
    %c0_i32_0 = arith.constant 0 : i32
    %c0_i32_1 = arith.constant 0 : i32
    return %c0_i32, %c0_i32_0 : i32, i32
  }
  func.func @transform_5(%arg0: i32) -> (i32, i32) {
    %c0_i32 = arith.constant 0 : i32
    %c0_i32_0 = arith.constant 0 : i32
    %c0_i32_1 = arith.constant 0 : i32
    return %c0_i32, %c0_i32_0 : i32, i32
  }
  func.func @transform_6(%arg0: i32) -> (i32, i32) {
    %c0_i32 = arith.constant 0 : i32
    %c0_i32_0 = arith.constant 0 : i32
    return %arg0, %c0_i32 : i32, i32
  }
  func.func @transform_7(%arg0: i32) -> (i32, i32) {
    %c0_i32 = arith.constant 0 : i32
    %c0_i32_0 = arith.constant 0 : i32
    return %arg0, %c0_i32 : i32, i32
  }
  func.func @transform_8(%arg0: i32) -> (i32, i32) {
    %c0_i32 = arith.constant 0 : i32
    %c0_i32_0 = arith.constant 0 : i32
    return %arg0, %c0_i32 : i32, i32
  }
  func.func @transform_9(%arg0: i32) -> (i32, i32) {
    %c0_i32 = arith.constant 0 : i32
    %c0_i32_0 = arith.constant 0 : i32
    return %arg0, %c0_i32 : i32, i32
  }
}

</mosaic_0001>

<llo_original>
// kernel: tpu_custom_call.1
$region0: #{tpu_custom_call.1}
  #allocation0 [shape = 'u32[]', space=smem, size = 0x4, offset = 0x4, fixed_abs, tag = 'smem constant byte address 0x4 - core index']
  #allocation1 [shape = 'u32[144,128]{1,0:T(1,128)}', space=vmem, size = 0x12000, scoped, tag = 'internal scratch']
  %s0 = inlined_call_operand.vmem [shape: s32[256,1], index: 0, kind: input, shape index: {}]
  %s1 = inlined_call_operand.vmem [shape: s32[256,1], index: 1, kind: input, shape index: {}]
  %s2 = inlined_call_operand.vmem [shape: f32[128,64], index: 2, kind: input, shape index: {}]
  %s3 = inlined_call_operand.vmem [shape: f32[128,128], index: 3, kind: input, shape index: {}]
  %s4 = inlined_call_operand.vmem [shape: f32[5,16], index: 4, kind: input, shape index: {}]
  %s5 = inlined_call_operand.vmem [shape: f32[1,128], index: 5, kind: input, shape index: {}]
  %s6 = inlined_call_operand.hbm [shape: f32[256,128], index: 6, kind: output, shape index: {0}]
  %s7 = inlined_call_operand.hbm [shape: f32[256,128], index: 7, kind: output, shape index: {1}]
  %s8 = inlined_call_operand.vmem [shape: f32[256,16], index: 8, kind: output, shape index: {2}]
  %s9 = inlined_call_operand.vmem [shape: f32[256,64], index: 9, kind: output, shape index: {3}]
  %10 = xla_tuple %s6, %s7, %s8, %s9
  %s11 = sld [smem:[#allocation0]]
  $region81: #{tpu_custom_call.1} parent=0
    _
  %s13 = ssub.s32 1, %s11
  %s14 = scalar_select 0, %s13, %s11
  $region1: #{tpu_custom_call.1} parent=0
    #allocation2 [shape = 'u8[65536]{0}', space=vmem, size = 0x10000, scoped, tag = 'output window, operand 0']
    #allocation3 [shape = 's32[2]{0}', space=sflag, size = 0x8, scoped, tag = 'scoped memory for tpu_custom_call.1']
    #allocation4 [shape = 'u8[65536]{0}', space=vmem, size = 0x10000, scoped, tag = 'output window, operand 1']
    #allocation5 [shape = 's32[2]{0}', space=sflag, size = 0x8, scoped, tag = 'scoped memory for tpu_custom_call.1']
    %15 = vsyncpa [#allocation3], 0
    %s16 = scalar_lea.sflag [#allocation3], 1
    %17 = vsyncpa %s16, 0
    %18 = vsyncpa [#allocation5], 0
    %s19 = scalar_lea.sflag [#allocation5], 1
    %20 = vsyncpa %s19, 0
    loop: start=0, step=1, limit=6
    $region2: #{tpu_custom_call.1} parent=1 // loop_pre_header
      _
    $region3: #{tpu_custom_call.1} parent=1 // loop_header
      %s22 = sphi 0, %s26
      %p23 = scmp.ge.s32.totalorder %s22, 6
      %s32 = sphi 0, %s34
      %s35 = sphi 0, %s32
      %s36 = sphi 0, %s35
      %s52 = sphi 0, %s36
      %s58 = sphi 0, %s60
      %s61 = sphi 0, %s58
      %s62 = sphi 0, %s61
      %s78 = sphi 0, %s62
      %s82 = sphi 0, %s82
      %s84 = sphi 0, %s82
      %s85 = sphi 0, %s84
      %s99 = sphi 0, %s85
      %s103 = sphi 0, %s103
      %s105 = sphi 0, %s103
      %s106 = sphi 0, %s105
      %s120 = sphi 0, %s106
      %s124 = sphi 0, %s124
      %s126 = sphi 0, %s124
      %s127 = sphi 0, %s126
      %s141 = sphi 0, %s127
      %s145 = sphi 0, %s145
      %s147 = sphi 0, %s145
      %s148 = sphi 0, %s147
      %s162 = sphi 0, %s148
      %s168 = sphi 0, %s170
      %s171 = sphi 0, %s168
      %s172 = sphi 0, %s171
      %s188 = sphi 0, %s172
      %s194 = sphi 0, %s196
      %s197 = sphi 0, %s194
      %s198 = sphi 0, %s197
      %s214 = sphi 0, %s198
      %s220 = sphi 0, %s222
      %s223 = sphi 0, %s220
      %s224 = sphi 0, %s223
      %s240 = sphi 0, %s224
      %s246 = sphi 0, %s248
      %s249 = sphi 0, %s246
      %s250 = sphi 0, %s249
      %s266 = sphi 0, %s250
    $region4: #{tpu_custom_call.1} parent=1 // loop_header_branch
      %25 = sbr.rel (%p23) target = $region8
    $region5: #{tpu_custom_call.1} parent=1 // loop_body
      %s27 = ssub.s32 %s22, 1
      %s28 = ssub.s32 %s22, 2
      %s29 = sadd.s32 %s22, 1
      %s30 = ssub.s32 %s22, %s29
      %p31 = scmp.eq.s32.totalorder %s30, 0
      %s33 = sadd.s32 %s32, 1
      %s34 = scalar_select %p31, %s32, %s33
      %p37 = pneg %p31
      %p38 = scmp.eq.s32.totalorder %s22, 3
      %p39 = por %p37, %p38
      %p40 = scmp.ne.s32.totalorder %s32, %s35
      %p41 = scmp.eq.s32.totalorder %s22, 0
      %p42 = por %p40, %p41
      %p43 = scmp.ne.s32.totalorder %s32, %s35
      %p44 = scmp.eq.s32.totalorder %s27, 3
      %p45 = por %p43, %p44
      %p46 = scmp.ne.s32.totalorder %s35, %s36
      %p47 = scmp.eq.s32.totalorder %s27, 0
      %p48 = por %p46, %p47
      %p49 = scmp.ne.s32.totalorder %s35, %s36
      %p50 = scmp.eq.s32.totalorder %s28, 3
      %p51 = por %p49, %p50
      %p53 = scmp.ne.s32.totalorder %s36, %s52
      %p54 = scmp.eq.s32.totalorder %s28, 0
      %p55 = por %p53, %p54
      %s56 = ssub.s32 %s22, %s29
      %p57 = scmp.eq.s32.totalorder %s56, 0
      %s59 = sadd.s32 %s58, 1
      %s60 = scalar_select %p57, %s58, %s59
      %p63 = pneg %p57
      %p64 = scmp.eq.s32.totalorder %s22, 3
      %p65 = por %p63, %p64
      %p66 = scmp.ne.s32.totalorder %s58, %s61
      %p67 = scmp.eq.s32.totalorder %s22, 0
      %p68 = por %p66, %p67
      %p69 = scmp.ne.s32.totalorder %s58, %s61
      %p70 = scmp.eq.s32.totalorder %s27, 3
      %p71 = por %p69, %p70
      %p72 = scmp.ne.s32.totalorder %s61, %s62
      %p73 = scmp.eq.s32.totalorder %s27, 0
      %p74 = por %p72, %p73
      %p75 = scmp.ne.s32.totalorder %s61, %s62
      %p76 = scmp.eq.s32.totalorder %s28, 3
      %p77 = por %p75, %p76
      %p79 = scmp.ne.s32.totalorder %s62, %s78
      %p80 = scmp.eq.s32.totalorder %s28, 0
      %p81 = por %p79, %p80
      %s83 = sadd.s32 %s82, 1
      %p86 = scmp.eq.s32.totalorder %s22, 3
      %p87 = scmp.ne.s32.totalorder %s82, %s84
      %p88 = scmp.eq.s32.totalorder %s22, 0
      %p89 = por %p87, %p88
      %p90 = scmp.ne.s32.totalorder %s82, %s84
      %p91 = scmp.eq.s32.totalorder %s27, 3
      %p92 = por %p90, %p91
      %p93 = scmp.ne.s32.totalorder %s84, %s85
      %p94 = scmp.eq.s32.totalorder %s27, 0
      %p95 = por %p93, %p94
      %p96 = scmp.ne.s32.totalorder %s84, %s85
      %p97 = scmp.eq.s32.totalorder %s28, 3
      %p98 = por %p96, %p97
      %p100 = scmp.ne.s32.totalorder %s85, %s99
      %p101 = scmp.eq.s32.totalorder %s28, 0
      %p102 = por %p100, %p101
      %s104 = sadd.s32 %s103, 1
      %p107 = scmp.eq.s32.totalorder %s22, 3
      %p108 = scmp.ne.s32.totalorder %s103, %s105
      %p109 = scmp.eq.s32.totalorder %s22, 0
      %p110 = por %p108, %p109
      %p111 = scmp.ne.s32.totalorder %s103, %s105
      %p112 = scmp.eq.s32.totalorder %s27, 3
      %p113 = por %p111, %p112
      %p114 = scmp.ne.s32.totalorder %s105, %s106
      %p115 = scmp.eq.s32.totalorder %s27, 0
      %p116 = por %p114, %p115
      %p117 = scmp.ne.s32.totalorder %s105, %s106
      %p118 = scmp.eq.s32.totalorder %s28, 3
      %p119 = por %p117, %p118
      %p121 = scmp.ne.s32.totalorder %s106, %s120
      %p122 = scmp.eq.s32.totalorder %s28, 0
      %p123 = por %p121, %p122
      %s125 = sadd.s32 %s124, 1
      %p128 = scmp.eq.s32.totalorder %s22, 3
      %p129 = scmp.ne.s32.totalorder %s124, %s126
      %p130 = scmp.eq.s32.totalorder %s22, 0
      %p131 = por %p129, %p130
      %p132 = scmp.ne.s32.totalorder %s124, %s126
      %p133 = scmp.eq.s32.totalorder %s27, 3
      %p134 = por %p132, %p133
      %p135 = scmp.ne.s32.totalorder %s126, %s127
      %p136 = scmp.eq.s32.totalorder %s27, 0
      %p137 = por %p135, %p136
      %p138 = scmp.ne.s32.totalorder %s126, %s127
      %p139 = scmp.eq.s32.totalorder %s28, 3
      %p140 = por %p138, %p139
      %p142 = scmp.ne.s32.totalorder %s127, %s141
      %p143 = scmp.eq.s32.totalorder %s28, 0
      %p144 = por %p142, %p143
      %s146 = sadd.s32 %s145, 1
      %p149 = scmp.eq.s32.totalorder %s22, 3
      %p150 = scmp.ne.s32.totalorder %s145, %s147
      %p151 = scmp.eq.s32.totalorder %s22, 0
      %p152 = por %p150, %p151
      %p153 = scmp.ne.s32.totalorder %s145, %s147
      %p154 = scmp.eq.s32.totalorder %s27, 3
      %p155 = por %p153, %p154
      %p156 = scmp.ne.s32.totalorder %s147, %s148
      %p157 = scmp.eq.s32.totalorder %s27, 0
      %p158 = por %p156, %p157
      %p159 = scmp.ne.s32.totalorder %s147, %s148
      %p160 = scmp.eq.s32.totalorder %s28, 3
      %p161 = por %p159, %p160
      %p163 = scmp.ne.s32.totalorder %s148, %s162
      %p164 = scmp.eq.s32.totalorder %s28, 0
      %p165 = por %p163, %p164
      %s166 = ssub.s32 %s22, %s29
      %p167 = scmp.eq.s32.totalorder %s166, 0
      %s169 = sadd.s32 %s168, 1
      %s170 = scalar_select %p167, %s168, %s169
      %p173 = pneg %p167
      %p174 = scmp.eq.s32.totalorder %s22, 3
      %p175 = por %p173, %p174
      %p176 = scmp.ne.s32.totalorder %s168, %s171
      %p177 = scmp.eq.s32.totalorder %s22, 0
      %p178 = por %p176, %p177
      %p179 = scmp.ne.s32.totalorder %s168, %s171
      %p180 = scmp.eq.s32.totalorder %s27, 3
      %p181 = por %p179, %p180
      %p182 = scmp.ne.s32.totalorder %s171, %s172
      %p183 = scmp.eq.s32.totalorder %s27, 0
      %p184 = por %p182, %p183
      %p185 = scmp.ne.s32.totalorder %s171, %s172
      %p186 = scmp.eq.s32.totalorder %s28, 3
      %p187 = por %p185, %p186
      %p189 = scmp.ne.s32.totalorder %s172, %s188
      %p190 = scmp.eq.s32.totalorder %s28, 0
      %p191 = por %p189, %p190
      %s192 = ssub.s32 %s22, %s29
      %p193 = scmp.eq.s32.totalorder %s192, 0
      %s195 = sadd.s32 %s194, 1
      %s196 = scalar_select %p193, %s194, %s195
      %p199 = pneg %p193
      %p200 = scmp.eq.s32.totalorder %s22, 3
      %p201 = por %p199, %p200
      %p202 = scmp.ne.s32.totalorder %s194, %s197
      %p203 = scmp.eq.s32.totalorder %s22, 0
      %p204 = por %p202, %p203
      %p205 = scmp.ne.s32.totalorder %s194, %s197
      %p206 = scmp.eq.s32.totalorder %s27, 3
      %p207 = por %p205, %p206
      %p208 = scmp.ne.s32.totalorder %s197, %s198
      %p209 = scmp.eq.s32.totalorder %s27, 0
      %p210 = por %p208, %p209
      %p211 = scmp.ne.s32.totalorder %s197, %s198
      %p212 = scmp.eq.s32.totalorder %s28, 3
      %p213 = por %p211, %p212
      %p215 = scmp.ne.s32.totalorder %s198, %s214
      %p216 = scmp.eq.s32.totalorder %s28, 0
      %p217 = por %p215, %p216
      %s218 = ssub.s32 %s22, %s29
      %p219 = scmp.eq.s32.totalorder %s218, 0
      %s221 = sadd.s32 %s220, 1
      %s222 = scalar_select %p219, %s220, %s221
      %p225 = pneg %p219
      %p226 = scmp.eq.s32.totalorder %s22, 3
      %p227 = por %p225, %p226
      %p228 = scmp.ne.s32.totalorder %s220, %s223
      %p229 = scmp.eq.s32.totalorder %s22, 0
      %p230 = por %p228, %p229
      %p231 = scmp.ne.s32.totalorder %s220, %s223
      %p232 = scmp.eq.s32.totalorder %s27, 3
      %p233 = por %p231, %p232
      %p234 = scmp.ne.s32.totalorder %s223, %s224
      %p235 = scmp.eq.s32.totalorder %s27, 0
      %p236 = por %p234, %p235
      %p237 = scmp.ne.s32.totalorder %s223, %s224
      %p238 = scmp.eq.s32.totalorder %s28, 3
      %p239 = por %p237, %p238
      %p241 = scmp.ne.s32.totalorder %s224, %s240
      %p242 = scmp.eq.s32.totalorder %s28, 0
      %p243 = por %p241, %p242
      %s244 = ssub.s32 %s22, %s29
      %p245 = scmp.eq.s32.totalorder %s244, 0
      %s247 = sadd.s32 %s246, 1
      %s248 = scalar_select %p245, %s246, %s247
      %p251 = pneg %p245
      %p252 = scmp.eq.s32.totalorder %s22, 3
      %p253 = por %p251, %p252
      %p254 = scmp.ne.s32.totalorder %s246, %s249
      %p255 = scmp.eq.s32.totalorder %s22, 0
      %p256 = por %p254, %p255
      %p257 = scmp.ne.s32.totalorder %s246, %s249
      %p258 = scmp.eq.s32.totalorder %s27, 3
      %p259 = por %p257, %p258
      %p260 = scmp.ne.s32.totalorder %s249, %s250
      %p261 = scmp.eq.s32.totalorder %s27, 0
      %p262 = por %p260, %p261
      %p263 = scmp.ne.s32.totalorder %s249, %s250
      %p264 = scmp.eq.s32.totalorder %s28, 3
      %p265 = por %p263, %p264
      %p267 = scmp.ne.s32.totalorder %s250, %s266
      %p268 = scmp.eq.s32.totalorder %s28, 0
      %p269 = por %p267, %p268
      %p270 = scmp.le.s32.totalorder 1, %s22
      %p271 = scmp.lt.s32.totalorder %s22, 5
      %p272 = pnand %p270, %p271
      %p273 = pneg %p272
      // Predicated region
      $region9: #{tpu_custom_call.1} parent=5 // pred_check
        _
      $region10: #{tpu_custom_call.1} parent=5 // pred_check_branch
        %275 = sbr.rel (%p272) target = $region12
      $region11: #{tpu_custom_call.1} parent=5 // pred_region
        %s276 = ssub.s32 %s22, 1
        // Predicated region
        $region13: #{tpu_custom_call.1} parent=11 // pred_check
          %p277 = pneg %p95
        $region14: #{tpu_custom_call.1} parent=11 // pred_check_branch
          %279 = sbr.rel (%p277) target = $region16
        $region15: #{tpu_custom_call.1} parent=11 // pred_region
          _
        $region16: #{tpu_custom_call.1} parent=11 // pred_fallthru
          _
        // Predicated region
        $region17: #{tpu_custom_call.1} parent=11 // pred_check
          %p280 = pneg %p116
        $region18: #{tpu_custom_call.1} parent=11 // pred_check_branch
          %282 = sbr.rel (%p280) target = $region20
        $region19: #{tpu_custom_call.1} parent=11 // pred_region
          _
        $region20: #{tpu_custom_call.1} parent=11 // pred_fallthru
          _
        // Predicated region
        $region21: #{tpu_custom_call.1} parent=11 // pred_check
          %p283 = pneg %p137
        $region22: #{tpu_custom_call.1} parent=11 // pred_check_branch
          %285 = sbr.rel (%p283) target = $region24
        $region23: #{tpu_custom_call.1} parent=11 // pred_region
          _
        $region24: #{tpu_custom_call.1} parent=11 // pred_fallthru
          _
        // Predicated region
        $region25: #{tpu_custom_call.1} parent=11 // pred_check
          %p286 = pneg %p158
        $region26: #{tpu_custom_call.1} parent=11 // pred_check_branch
          %288 = sbr.rel (%p286) target = $region28
        $region27: #{tpu_custom_call.1} parent=11 // pred_region
          _
        $region28: #{tpu_custom_call.1} parent=11 // pred_fallthru
          _
      $region12: #{tpu_custom_call.1} parent=5 // pred_fallthru
        _
      %p289 = scmp.lt.s32.totalorder %s22, 4
      // Predicated region
      $region29: #{tpu_custom_call.1} parent=5 // pred_check
        %p290 = pneg %p289
      $region30: #{tpu_custom_call.1} parent=5 // pred_check_branch
        %292 = sbr.rel (%p290) target = $region32
      $region31: #{tpu_custom_call.1} parent=5 // pred_region
        // Predicated region
        $region33: #{tpu_custom_call.1} parent=31 // pred_check
          %p293 = pneg %p42
        $region34: #{tpu_custom_call.1} parent=31 // pred_check_branch
          %295 = sbr.rel (%p293) target = $region36
        $region35: #{tpu_custom_call.1} parent=31 // pred_region
          %s296 = smul.u32 8, %s22
          %p297 = scmp.lt.s32.totalorder %s296, 31
          %s298 = scalar_select %p297, %s296, 31
          %s299 = smul.addr %s298, 8
          %s300 = scalar_lea.vmem %s0, %s299
          %s301 = smul.u32 8, %s22
        $region36: #{tpu_custom_call.1} parent=31 // pred_fallthru
          _
        // Predicated region
        $region37: #{tpu_custom_call.1} parent=31 // pred_check
          %p302 = pneg %p68
        $region38: #{tpu_custom_call.1} parent=31 // pred_check_branch
          %304 = sbr.rel (%p302) target = $region40
        $region39: #{tpu_custom_call.1} parent=31 // pred_region
          %s305 = smul.u32 8, %s22
          %p306 = scmp.lt.s32.totalorder %s305, 31
          %s307 = scalar_select %p306, %s305, 31
          %s308 = smul.addr %s307, 8
          %s309 = scalar_lea.vmem %s1, %s308
          %s310 = smul.u32 8, %s22
        $region40: #{tpu_custom_call.1} parent=31 // pred_fallthru
          _
      $region32: #{tpu_custom_call.1} parent=5 // pred_fallthru
        _
      %p311 = scmp.le.s32.totalorder 1, %s22
      %p312 = scmp.lt.s32.totalorder %s22, 5
      %p313 = pnand %p311, %p312
      %p314 = pneg %p313
      // Predicated region
      $region41: #{tpu_custom_call.1} parent=5 // pred_check
        _
      $region42: #{tpu_custom_call.1} parent=5 // pred_check_branch
        %316 = sbr.rel (%p313) target = $region44
      $region43: #{tpu_custom_call.1} parent=5 // pred_region
        %s317 = ssub.s32 %s22, 1
        %s318 = smul.u32 8, %s27
        %p319 = scmp.lt.s32.totalorder %s318, 31
        %s320 = scalar_select %p319, %s318, 31
        %s321 = smul.addr %s320, 8
        %s322 = scalar_lea.vmem %s0, %s321
        %p323 = pneg %p48
        %p324 = pneg %p45
        %s325 = smul.u32 8, %s27
        %p326 = scmp.lt.s32.totalorder %s325, 31
        %s327 = scalar_select %p326, %s325, 31
        %s328 = smul.addr %s327, 8
        %s329 = scalar_lea.vmem %s1, %s328
        %p330 = pneg %p74
        %p331 = pneg %p71
        %p332 = pneg %p95
        %p333 = pneg %p92
        %p334 = pneg %p116
        %p335 = pneg %p113
        %p336 = pneg %p137
        %p337 = pneg %p134
        %p338 = pneg %p158
        %p339 = pneg %p155
        %p340 = pneg %p184
        %p341 = pneg %p181
        %s342 = sand.u32 %s171, 1
        %s343 = scalar_lea.sflag [#allocation3], %s342
        %s344 = sand.u32 %s171, 1
        %s345 = smul.addr %s344, 64
        %s346 = scalar_lea.vmem [#allocation2], %s345
        %p347 = pneg %p210
        %p348 = pneg %p207
        %s349 = sand.u32 %s197, 1
        %s350 = scalar_lea.sflag [#allocation5], %s349
        %s351 = sand.u32 %s197, 1
        %s352 = smul.addr %s351, 64
        %s353 = scalar_lea.vmem [#allocation4], %s352
        %p354 = pneg %p236
        %p355 = pneg %p233
        %s356 = smul.u32 8, %s27
        %p357 = scmp.lt.s32.totalorder %s356, 31
        %s358 = scalar_select %p357, %s356, 31
        %s359 = smul.addr %s358, 8
        %s360 = scalar_lea.vmem %s8, %s359
        %p361 = pneg %p262
        %p362 = pneg %p259
        %s363 = smul.u32 8, %s27
        %p364 = scmp.lt.s32.totalorder %s363, 31
        %s365 = scalar_select %p364, %s363, 31
        %s366 = smul.addr %s365, 8
        %s367 = scalar_lea.vmem %s9, %s366
        %s368 = smul.u32 8, %s27
        %p369 = scmp.lt.s32.totalorder %s368, 31
        %s370 = scalar_select %p369, %s368, 31
        %s371 = smul.addr %s370, 8
        %s372 = scalar_lea.vmem %s0, %s371
        %s373 = smul.u32 8, %s27
        %s374 = smul.u32 8, %s27
        %p375 = scmp.lt.s32.totalorder %s374, 31
        %s376 = scalar_select %p375, %s374, 31
        %s377 = smul.addr %s376, 8
        %s378 = scalar_lea.vmem %s1, %s377
        %s379 = smul.u32 8, %s27
        %s380 = smul.u32 8, %s27
        %s381 = smul.u32 8, %s27
        %s382 = smul.u32 8, %s27
        %p383 = scmp.lt.s32.totalorder %s382, 31
        %s384 = scalar_select %p383, %s382, 31
        %s385 = smul.addr %s384, 8
        %s386 = scalar_lea.vmem %s8, %s385
        %s387 = smul.u32 8, %s27
        %s388 = smul.u32 8, %s27
        %p389 = scmp.lt.s32.totalorder %s388, 31
        %s390 = scalar_select %p389, %s388, 31
        %s391 = smul.addr %s390, 8
        %s392 = scalar_lea.vmem %s9, %s391
        %s393 = smul.u32 8, %s27
        %v394 = vld [vmem:[%s372] sm:$0xff]
        %v395 = vld [vmem:[%s372 + $0x8] sm:$0xff]
        %v396 = vld [vmem:[%s372 + $0x10] sm:$0xff]
        %v397 = vld [vmem:[%s372 + $0x18] sm:$0xff]
        %v398 = vld [vmem:[%s372 + $0x20] sm:$0xff]
        %v399 = vld [vmem:[%s372 + $0x28] sm:$0xff]
        %v400 = vld [vmem:[%s372 + $0x30] sm:$0xff]
        %v401 = vld [vmem:[%s372 + $0x38] sm:$0xff]
        %v402 = vld [vmem:[%s378] sm:$0xff]
        %v403 = vld [vmem:[%s378 + $0x8] sm:$0xff]
        %v404 = vld [vmem:[%s378 + $0x10] sm:$0xff]
        %v405 = vld [vmem:[%s378 + $0x18] sm:$0xff]
        %v406 = vld [vmem:[%s378 + $0x20] sm:$0xff]
        %v407 = vld [vmem:[%s378 + $0x28] sm:$0xff]
        %v408 = vld [vmem:[%s378 + $0x30] sm:$0xff]
        %v409 = vld [vmem:[%s378 + $0x38] sm:$0xff]
        %v410 = vld [vmem:[%s3] sm:$0xff]
        %v411 = vld [vmem:[%s3 + $0x8] sm:$0xff]
        %v412 = vld [vmem:[%s3 + $0x10] sm:$0xff]
        %v413 = vld [vmem:[%s3 + $0x18] sm:$0xff]
        %v414 = vld [vmem:[%s3 + $0x20] sm:$0xff]
        %v415 = vld [vmem:[%s3 + $0x28] sm:$0xff]
        %v416 = vld [vmem:[%s3 + $0x30] sm:$0xff]
        %v417 = vld [vmem:[%s3 + $0x38] sm:$0xff]
        %v418 = vld [vmem:[%s3 + $0x40] sm:$0xff]
        %v419 = vld [vmem:[%s3 + $0x48] sm:$0xff]
        %v420 = vld [vmem:[%s3 + $0x50] sm:$0xff]
        %v421 = vld [vmem:[%s3 + $0x58] sm:$0xff]
        %v422 = vld [vmem:[%s3 + $0x60] sm:$0xff]
        %v423 = vld [vmem:[%s3 + $0x68] sm:$0xff]
        %v424 = vld [vmem:[%s3 + $0x70] sm:$0xff]
        %v425 = vld [vmem:[%s3 + $0x78] sm:$0xff]
        %v426 = vadd.s32 %v402, 1
        %v427 = vadd.s32 %v403, 1
        %v428 = vadd.s32 %v404, 1
        %v429 = vadd.s32 %v405, 1
        %v430 = vadd.s32 %v406, 1
        %v431 = vadd.s32 %v407, 1
        %v432 = vadd.s32 %v408, 1
        %v433 = vadd.s32 %v409, 1
        %v434 = vsub.s32 %v426, %v394
        %v435 = vsub.s32 %v427, %v395
        %v436 = vsub.s32 %v428, %v396
        %v437 = vsub.s32 %v429, %v397
        %v438 = vsub.s32 %v430, %v398
        %v439 = vsub.s32 %v431, %v399
        %v440 = vsub.s32 %v432, %v400
        %v441 = vsub.s32 %v433, %v401
        %v442 = vsub.s32 %v434, 1
        %v443 = vsub.s32 %v435, 1
        %v444 = vsub.s32 %v436, 1
        %v445 = vsub.s32 %v437, 1
        %v446 = vsub.s32 %v438, 1
        %v447 = vsub.s32 %v439, 1
        %v448 = vsub.s32 %v440, 1
        %v449 = vsub.s32 %v441, 1
        %vm450 = vcmp.lt.s32.totalorder %v442, 4
        %v451 = vsel %vm450, %v442, 4
        %vm452 = vcmp.lt.s32.totalorder %v443, 4
        %v453 = vsel %vm452, %v443, 4
        %vm454 = vcmp.lt.s32.totalorder %v444, 4
        %v455 = vsel %vm454, %v444, 4
        %vm456 = vcmp.lt.s32.totalorder %v445, 4
        %v457 = vsel %vm456, %v445, 4
        %vm458 = vcmp.lt.s32.totalorder %v446, 4
        %v459 = vsel %vm458, %v446, 4
        %vm460 = vcmp.lt.s32.totalorder %v447, 4
        %v461 = vsel %vm460, %v447, 4
        %vm462 = vcmp.lt.s32.totalorder %v448, 4
        %v463 = vsel %vm462, %v448, 4
        %vm464 = vcmp.lt.s32.totalorder %v449, 4
        %v465 = vsel %vm464, %v449, 4
        %v466 = vlaneseq
        %v467 = vand.u32 %v466, 127
        %468 = vset.pattern.permute.xlu0 0
        %469 = vperm.xlu0 %468, %v394
        %v470 = vpop.permute.xlu0 %469
        %471 = vset.pattern.permute.xlu0 0
        %472 = vperm.xlu0 %471, %v395
        %v473 = vpop.permute.xlu0 %472
        %474 = vset.pattern.permute.xlu0 0
        %475 = vperm.xlu0 %474, %v396
        %v476 = vpop.permute.xlu0 %475
        %477 = vset.pattern.permute.xlu0 0
        %478 = vperm.xlu0 %477, %v397
        %v479 = vpop.permute.xlu0 %478
        %480 = vset.pattern.permute.xlu0 0
        %481 = vperm.xlu0 %480, %v398
        %v482 = vpop.permute.xlu0 %481
        %483 = vset.pattern.permute.xlu0 0
        %484 = vperm.xlu0 %483, %v399
        %v485 = vpop.permute.xlu0 %484
        %486 = vset.pattern.permute.xlu0 0
        %487 = vperm.xlu0 %486, %v400
        %v488 = vpop.permute.xlu0 %487
        %489 = vset.pattern.permute.xlu0 0
        %490 = vperm.xlu0 %489, %v401
        %v491 = vpop.permute.xlu0 %490
        %vm492 = vcmp.eq.s32.totalorder %v470, %v467
        %vm493 = vcmp.eq.s32.totalorder %v473, %v467
        %vm494 = vcmp.eq.s32.totalorder %v476, %v467
        %vm495 = vcmp.eq.s32.totalorder %v479, %v467
        %vm496 = vcmp.eq.s32.totalorder %v482, %v467
        %vm497 = vcmp.eq.s32.totalorder %v485, %v467
        %vm498 = vcmp.eq.s32.totalorder %v488, %v467
        %vm499 = vcmp.eq.s32.totalorder %v491, %v467
        %v500 = vsel %vm492, 1, 0
        %v501 = vsel %vm493, 1, 0
        %v502 = vsel %vm494, 1, 0
        %v503 = vsel %vm495, 1, 0
        %v504 = vsel %vm496, 1, 0
        %v505 = vsel %vm497, 1, 0
        %v506 = vsel %vm498, 1, 0
        %v507 = vsel %vm499, 1, 0
        %v508 = vcvt.s32.f32 %v500
        %v509 = vcvt.s32.f32 %v501
        %v510 = vcvt.s32.f32 %v502
        %v511 = vcvt.s32.f32 %v503
        %v512 = vcvt.s32.f32 %v504
        %v513 = vcvt.s32.f32 %v505
        %v514 = vcvt.s32.f32 %v506
        %v515 = vcvt.s32.f32 %v507
        %516 = vset.pattern.permute.xlu0 0
        %517 = vperm.xlu0 %516, %v402
        %v518 = vpop.permute.xlu0 %517
        %519 = vset.pattern.permute.xlu0 0
        %520 = vperm.xlu0 %519, %v403
        %v521 = vpop.permute.xlu0 %520
        %522 = vset.pattern.permute.xlu0 0
        %523 = vperm.xlu0 %522, %v404
        %v524 = vpop.permute.xlu0 %523
        %525 = vset.pattern.permute.xlu0 0
        %526 = vperm.xlu0 %525, %v405
        %v527 = vpop.permute.xlu0 %526
        %528 = vset.pattern.permute.xlu0 0
        %529 = vperm.xlu0 %528, %v406
        %v530 = vpop.permute.xlu0 %529
        %531 = vset.pattern.permute.xlu0 0
        %532 = vperm.xlu0 %531, %v407
        %v533 = vpop.permute.xlu0 %532
        %534 = vset.pattern.permute.xlu0 0
        %535 = vperm.xlu0 %534, %v408
        %v536 = vpop.permute.xlu0 %535
        %537 = vset.pattern.permute.xlu0 0
        %538 = vperm.xlu0 %537, %v409
        %v539 = vpop.permute.xlu0 %538
        %vm540 = vcmp.eq.s32.totalorder %v518, %v467
        %vm541 = vcmp.eq.s32.totalorder %v521, %v467
        %vm542 = vcmp.eq.s32.totalorder %v524, %v467
        %vm543 = vcmp.eq.s32.totalorder %v527, %v467
        %vm544 = vcmp.eq.s32.totalorder %v530, %v467
        %vm545 = vcmp.eq.s32.totalorder %v533, %v467
        %vm546 = vcmp.eq.s32.totalorder %v536, %v467
        %vm547 = vcmp.eq.s32.totalorder %v539, %v467
        %v548 = vsel %vm540, 1, 0
        %v549 = vsel %vm541, 1, 0
        %v550 = vsel %vm542, 1, 0
        %v551 = vsel %vm543, 1, 0
        %v552 = vsel %vm544, 1, 0
        %v553 = vsel %vm545, 1, 0
        %v554 = vsel %vm546, 1, 0
        %v555 = vsel %vm547, 1, 0
        %v556 = vcvt.s32.f32 %v548
        %v557 = vcvt.s32.f32 %v549
        %v558 = vcvt.s32.f32 %v550
        %v559 = vcvt.s32.f32 %v551
        %v560 = vcvt.s32.f32 %v552
        %v561 = vcvt.s32.f32 %v553
        %v562 = vcvt.s32.f32 %v554
        %v563 = vcvt.s32.f32 %v555
        %564 = vmatprep.subr.mxu0 0.0
        %565 = vmatpush1.msra.mxu0 %v410
        %566 = vmatprep.subr.mxu0 0.0
        %567 = vmatpush1.msra.mxu0 %v411
        %568 = vmatprep.subr.mxu0 0.0
        %569 = vmatpush1.msra.mxu0 %v412
        %570 = vmatprep.subr.mxu0 0.0
        %571 = vmatpush1.msra.mxu0 %v413
        %572 = vmatprep.subr.mxu0 0.0
        %573 = vmatpush1.msra.mxu0 %v414
        %574 = vmatprep.subr.mxu0 0.0
        %575 = vmatpush1.msra.mxu0 %v415
        %576 = vmatprep.subr.mxu0 0.0
        %577 = vmatpush1.msra.mxu0 %v416
        %578 = vmatprep.subr.mxu0 0.0
        %579 = vmatpush1.msra.mxu0 %v417
        %580 = vmatprep.subr.mxu0 0.0
        %581 = vmatpush1.msra.mxu0 %v418
        %582 = vmatprep.subr.mxu0 0.0
        %583 = vmatpush1.msra.mxu0 %v419
        %584 = vmatprep.subr.mxu0 0.0
        %585 = vmatpush1.msra.mxu0 %v420
        %586 = vmatprep.subr.mxu0 0.0
        %587 = vmatpush1.msra.mxu0 %v421
        %588 = vmatprep.subr.mxu0 0.0
        %589 = vmatpush1.msra.mxu0 %v422
        %590 = vmatprep.subr.mxu0 0.0
        %591 = vmatpush1.msra.mxu0 %v423
        %592 = vmatprep.subr.mxu0 0.0
        %593 = vmatpush1.msra.mxu0 %v424
        %594 = vmatprep.subr.mxu0 0.0
        %595 = vmatpush1.msra.mxu0 %v425
        %596 = vmatprep.subr.mxu0 0.0
        %597 = vmatpush1.msra.mxu0 0.0
        %598 = vmatprep.subr.mxu0 0.0
        %599 = vmatpush1.msra.mxu0 0.0
        %600 = vmatprep.subr.mxu0 0.0
        %601 = vmatpush1.msra.mxu0 0.0
        %602 = vmatprep.subr.mxu0 0.0
        %603 = vmatpush1.msra.mxu0 0.0
        %604 = vmatprep.subr.mxu0 0.0
        %605 = vmatpush1.msra.mxu0 0.0
        %606 = vmatprep.subr.mxu0 0.0
        %607 = vmatpush1.msra.mxu0 0.0
        %608 = vmatprep.subr.mxu0 0.0
        %609 = vmatpush1.msra.mxu0 0.0
        %610 = vmatprep.subr.mxu0 0.0
        %611 = vmatpush1.msra.mxu0 0.0
        %612 = vmatprep.subr.mxu0 0.0
        %613 = vmatpush1.msra.mxu0 0.0
        %614 = vmatprep.subr.mxu0 0.0
        %615 = vmatpush1.msra.mxu0 0.0
        %616 = vmatprep.subr.mxu0 0.0
        %617 = vmatpush1.msra.mxu0 0.0
        %618 = vmatprep.subr.mxu0 0.0
        %619 = vmatpush1.msra.mxu0 0.0
        %620 = vmatprep.subr.mxu0 0.0
        %621 = vmatpush1.msra.mxu0 0.0
        %622 = vmatprep.subr.mxu0 0.0
        %623 = vmatpush1.msra.mxu0 0.0
        %624 = vmatprep.subr.mxu0 0.0
        %625 = vmatpush1.msra.mxu0 0.0
        %626 = vmatprep.subr.mxu0 0.0
        %627 = vmatpush1.msra.mxu0 0.0
        %628 = vmatprep.mubr.f32.mxu0 0.0
        %629 = vmatmul.mubr.f32.gmra.mrb[0].mxu0 %v508
        %v630 = vpop.f32.mrb[0].mxu0
        %v631 = vadd.f32 0.0, %v630
        %v632 = vpop.f32.mrb[0].mxu0
        %633 = vmatprep.mubr.f32.mxu0 0.0
        %634 = vmatmul.mubr.f32.gmra.mrb[0].mxu0 %v509
        %v635 = vpop.f32.mrb[0].mxu0
        %v636 = vadd.f32 0.0, %v635
        %v637 = vpop.f32.mrb[0].mxu0
        %638 = vmatprep.mubr.f32.mxu0 0.0
        %639 = vmatmul.mubr.f32.gmra.mrb[0].mxu0 %v510
        %v640 = vpop.f32.mrb[0].mxu0
        %v641 = vadd.f32 0.0, %v640
        %v642 = vpop.f32.mrb[0].mxu0
        %643 = vmatprep.mubr.f32.mxu0 0.0
        %644 = vmatmul.mubr.f32.gmra.mrb[0].mxu0 %v511
        %v645 = vpop.f32.mrb[0].mxu0
        %v646 = vadd.f32 0.0, %v645
        %v647 = vpop.f32.mrb[0].mxu0
        %648 = vmatprep.mubr.f32.mxu0 0.0
        %649 = vmatmul.mubr.f32.gmra.mrb[0].mxu0 %v512
        %v650 = vpop.f32.mrb[0].mxu0
        %v651 = vadd.f32 0.0, %v650
        %v652 = vpop.f32.mrb[0].mxu0
        %653 = vmatprep.mubr.f32.mxu0 0.0
        %654 = vmatmul.mubr.f32.gmra.mrb[0].mxu0 %v513
        %v655 = vpop.f32.mrb[0].mxu0
        %v656 = vadd.f32 0.0, %v655
        %v657 = vpop.f32.mrb[0].mxu0
        %658 = vmatprep.mubr.f32.mxu0 0.0
        %659 = vmatmul.mubr.f32.gmra.mrb[0].mxu0 %v514
        %v660 = vpop.f32.mrb[0].mxu0
        %v661 = vadd.f32 0.0, %v660
        %v662 = vpop.f32.mrb[0].mxu0
        %663 = vmatprep.mubr.f32.mxu0 0.0
        %664 = vmatmul.mubr.f32.gmra.mrb[0].mxu0 %v515
        %v665 = vpop.f32.mrb[0].mxu0
        %v666 = vadd.f32 0.0, %v665
        %v667 = vpop.f32.mrb[0].mxu0
        %668 = vdwg.mxu0
        %669 = vst [vmem:[%s346] sm:$0xff] %v631
        %670 = vst [vmem:[%s346 + $0x8] sm:$0xff] %v636
        %671 = vst [vmem:[%s346 + $0x10] sm:$0xff] %v641
        %672 = vst [vmem:[%s346 + $0x18] sm:$0xff] %v646
        %673 = vst [vmem:[%s346 + $0x20] sm:$0xff] %v651
        %674 = vst [vmem:[%s346 + $0x28] sm:$0xff] %v656
        %675 = vst [vmem:[%s346 + $0x30] sm:$0xff] %v661
        %676 = vst [vmem:[%s346 + $0x38] sm:$0xff] %v666
        %677 = vmatprep.subr.mxu0 0.0
        %678 = vmatpush1.msra.mxu0 %v410
        %679 = vmatprep.subr.mxu0 0.0
        %680 = vmatpush1.msra.mxu0 %v411
        %681 = vmatprep.subr.mxu0 0.0
        %682 = vmatpush1.msra.mxu0 %v412
        %683 = vmatprep.subr.mxu0 0.0
        %684 = vmatpush1.msra.mxu0 %v413
        %685 = vmatprep.subr.mxu0 0.0
        %686 = vmatpush1.msra.mxu0 %v414
        %687 = vmatprep.subr.mxu0 0.0
        %688 = vmatpush1.msra.mxu0 %v415
        %689 = vmatprep.subr.mxu0 0.0
        %690 = vmatpush1.msra.mxu0 %v416
        %691 = vmatprep.subr.mxu0 0.0
        %692 = vmatpush1.msra.mxu0 %v417
        %693 = vmatprep.subr.mxu0 0.0
        %694 = vmatpush1.msra.mxu0 %v418
        %695 = vmatprep.subr.mxu0 0.0
        %696 = vmatpush1.msra.mxu0 %v419
        %697 = vmatprep.subr.mxu0 0.0
        %698 = vmatpush1.msra.mxu0 %v420
        %699 = vmatprep.subr.mxu0 0.0
        %700 = vmatpush1.msra.mxu0 %v421
        %701 = vmatprep.subr.mxu0 0.0
        %702 = vmatpush1.msra.mxu0 %v422
        %703 = vmatprep.subr.mxu0 0.0
        %704 = vmatpush1.msra.mxu0 %v423
        %705 = vmatprep.subr.mxu0 0.0
        %706 = vmatpush1.msra.mxu0 %v424
        %707 = vmatprep.subr.mxu0 0.0
        %708 = vmatpush1.msra.mxu0 %v425
        %709 = vmatprep.subr.mxu0 0.0
        %710 = vmatpush1.msra.mxu0 0.0
        %711 = vmatprep.subr.mxu0 0.0
        %712 = vmatpush1.msra.mxu0 0.0
        %713 = vmatprep.subr.mxu0 0.0
        %714 = vmatpush1.msra.mxu0 0.0
        %715 = vmatprep.subr.mxu0 0.0
        %716 = vmatpush1.msra.mxu0 0.0
        %717 = vmatprep.subr.mxu0 0.0
        %718 = vmatpush1.msra.mxu0 0.0
        %719 = vmatprep.subr.mxu0 0.0
        %720 = vmatpush1.msra.mxu0 0.0
        %721 = vmatprep.subr.mxu0 0.0
        %722 = vmatpush1.msra.mxu0 0.0
        %723 = vmatprep.subr.mxu0 0.0
        %724 = vmatpush1.msra.mxu0 0.0
        %725 = vmatprep.subr.mxu0 0.0
        %726 = vmatpush1.msra.mxu0 0.0
        %727 = vmatprep.subr.mxu0 0.0
        %728 = vmatpush1.msra.mxu0 0.0
        %729 = vmatprep.subr.mxu0 0.0
        %730 = vmatpush1.msra.mxu0 0.0
        %731 = vmatprep.subr.mxu0 0.0
        %732 = vmatpush1.msra.mxu0 0.0
        %733 = vmatprep.subr.mxu0 0.0
        %734 = vmatpush1.msra.mxu0 0.0
        %735 = vmatprep.subr.mxu0 0.0
        %736 = vmatpush1.msra.mxu0 0.0
        %737 = vmatprep.subr.mxu0 0.0
        %738 = vmatpush1.msra.mxu0 0.0
        %739 = vmatprep.subr.mxu0 0.0
        %740 = vmatpush1.msra.mxu0 0.0
        %741 = vmatprep.mubr.f32.mxu0 0.0
        %742 = vmatmul.mubr.f32.gmra.mrb[0].mxu0 %v556
        %v743 = vpop.f32.mrb[0].mxu0
        %v744 = vadd.f32 0.0, %v743
        %v745 = vpop.f32.mrb[0].mxu0
        %746 = vmatprep.mubr.f32.mxu0 0.0
        %747 = vmatmul.mubr.f32.gmra.mrb[0].mxu0 %v557
        %v748 = vpop.f32.mrb[0].mxu0
        %v749 = vadd.f32 0.0, %v748
        %v750 = vpop.f32.mrb[0].mxu0
        %751 = vmatprep.mubr.f32.mxu0 0.0
        %752 = vmatmul.mubr.f32.gmra.mrb[0].mxu0 %v558
        %v753 = vpop.f32.mrb[0].mxu0
        %v754 = vadd.f32 0.0, %v753
        %v755 = vpop.f32.mrb[0].mxu0
        %756 = vmatprep.mubr.f32.mxu0 0.0
        %757 = vmatmul.mubr.f32.gmra.mrb[0].mxu0 %v559
        %v758 = vpop.f32.mrb[0].mxu0
        %v759 = vadd.f32 0.0, %v758
        %v760 = vpop.f32.mrb[0].mxu0
        %761 = vmatprep.mubr.f32.mxu0 0.0
        %762 = vmatmul.mubr.f32.gmra.mrb[0].mxu0 %v560
        %v763 = vpop.f32.mrb[0].mxu0
        %v764 = vadd.f32 0.0, %v763
        %v765 = vpop.f32.mrb[0].mxu0
        %766 = vmatprep.mubr.f32.mxu0 0.0
        %767 = vmatmul.mubr.f32.gmra.mrb[0].mxu0 %v561
        %v768 = vpop.f32.mrb[0].mxu0
        %v769 = vadd.f32 0.0, %v768
        %v770 = vpop.f32.mrb[0].mxu0
        %771 = vmatprep.mubr.f32.mxu0 0.0
        %772 = vmatmul.mubr.f32.gmra.mrb[0].mxu0 %v562
        %v773 = vpop.f32.mrb[0].mxu0
        %v774 = vadd.f32 0.0, %v773
        %v775 = vpop.f32.mrb[0].mxu0
        %776 = vmatprep.mubr.f32.mxu0 0.0
        %777 = vmatmul.mubr.f32.gmra.mrb[0].mxu0 %v563
        %v778 = vpop.f32.mrb[0].mxu0
        %v779 = vadd.f32 0.0, %v778
        %v780 = vpop.f32.mrb[0].mxu0
        %781 = vdwg.mxu0
        %782 = vst [vmem:[%s353] sm:$0xff] %v744
        %783 = vst [vmem:[%s353 + $0x8] sm:$0xff] %v749
        %784 = vst [vmem:[%s353 + $0x10] sm:$0xff] %v754
        %785 = vst [vmem:[%s353 + $0x18] sm:$0xff] %v759
        %786 = vst [vmem:[%s353 + $0x20] sm:$0xff] %v764
        %787 = vst [vmem:[%s353 + $0x28] sm:$0xff] %v769
        %788 = vst [vmem:[%s353 + $0x30] sm:$0xff] %v774
        %789 = vst [vmem:[%s353 + $0x38] sm:$0xff] %v779
        %v790 = vld [vmem:[%s4] sm:$0x1f]
        %vm791 = vcmp.eq.s32.totalorder %v451, 0
        %vm792 = vcmp.eq.s32.totalorder %v453, 0
        %vm793 = vcmp.eq.s32.totalorder %v455, 0
        %vm794 = vcmp.eq.s32.totalorder %v457, 0
        %vm795 = vcmp.eq.s32.totalorder %v459, 0
        %vm796 = vcmp.eq.s32.totalorder %v461, 0
        %vm797 = vcmp.eq.s32.totalorder %v463, 0
        %vm798 = vcmp.eq.s32.totalorder %v465, 0
        %v799 = vsel %vm791, 1, 0
        %v800 = vsel %vm792, 1, 0
        %v801 = vsel %vm793, 1, 0
        %v802 = vsel %vm794, 1, 0
        %v803 = vsel %vm795, 1, 0
        %v804 = vsel %vm796, 1, 0
        %v805 = vsel %vm797, 1, 0
        %v806 = vsel %vm798, 1, 0
        %v807 = vcvt.s32.f32 %v799
        %v808 = vcvt.s32.f32 %v800
        %v809 = vcvt.s32.f32 %v801
        %v810 = vcvt.s32.f32 %v802
        %v811 = vcvt.s32.f32 %v803
        %v812 = vcvt.s32.f32 %v804
        %v813 = vcvt.s32.f32 %v805
        %v814 = vcvt.s32.f32 %v806
        %816 = vset.pattern.permute.xlu0 0
        %817 = vperm.xlu0 %816, %v807
        %v818 = vpop.permute.xlu0 %817
        %821 = vset.pattern.permute.xlu0 0
        %822 = vperm.xlu0 %821, %v808
        %v823 = vpop.permute.xlu0 %822
        %826 = vset.pattern.permute.xlu0 0
        %827 = vperm.xlu0 %826, %v809
        %v828 = vpop.permute.xlu0 %827
        %831 = vset.pattern.permute.xlu0 0
        %832 = vperm.xlu0 %831, %v810
        %v833 = vpop.permute.xlu0 %832
        %836 = vset.pattern.permute.xlu0 0
        %837 = vperm.xlu0 %836, %v811
        %v838 = vpop.permute.xlu0 %837
        %841 = vset.pattern.permute.xlu0 0
        %842 = vperm.xlu0 %841, %v812
        %v843 = vpop.permute.xlu0 %842
        %846 = vset.pattern.permute.xlu0 0
        %847 = vperm.xlu0 %846, %v813
        %v848 = vpop.permute.xlu0 %847
        %851 = vset.pattern.permute.xlu0 0
        %852 = vperm.xlu0 %851, %v814
        %v853 = vpop.permute.xlu0 %852
        %v855 = vlaneseq
        %v856 = vshrl.u32 %v855, 7
        %v857 = vsub.s32 0, %v856
        %v858 = vrot.slane %v790, %v857
        %v859 = vmul.f32 %v818, %v858
        %v860 = vmul.f32 %v823, %v858
        %v861 = vmul.f32 %v828, %v858
        %v862 = vmul.f32 %v833, %v858
        %v863 = vmul.f32 %v838, %v858
        %v864 = vmul.f32 %v843, %v858
        %v865 = vmul.f32 %v848, %v858
        %v866 = vmul.f32 %v853, %v858
        %v867 = vadd.f32 %v859, 0.0
        %v868 = vadd.f32 %v860, 0.0
        %v869 = vadd.f32 %v861, 0.0
        %v870 = vadd.f32 %v862, 0.0
        %v871 = vadd.f32 %v863, 0.0
        %v872 = vadd.f32 %v864, 0.0
        %v873 = vadd.f32 %v865, 0.0
        %v874 = vadd.f32 %v866, 0.0
        %vm875 = vcmp.eq.s32.totalorder %v451, 1
        %vm876 = vcmp.eq.s32.totalorder %v453, 1
        %vm877 = vcmp.eq.s32.totalorder %v455, 1
        %vm878 = vcmp.eq.s32.totalorder %v457, 1
        %vm879 = vcmp.eq.s32.totalorder %v459, 1
        %vm880 = vcmp.eq.s32.totalorder %v461, 1
        %vm881 = vcmp.eq.s32.totalorder %v463, 1
        %vm882 = vcmp.eq.s32.totalorder %v465, 1
        %v883 = vsel %vm875, 1, 0
        %v884 = vsel %vm876, 1, 0
        %v885 = vsel %vm877, 1, 0
        %v886 = vsel %vm878, 1, 0
        %v887 = vsel %vm879, 1, 0
        %v888 = vsel %vm880, 1, 0
        %v889 = vsel %vm881, 1, 0
        %v890 = vsel %vm882, 1, 0
        %v891 = vcvt.s32.f32 %v883
        %v892 = vcvt.s32.f32 %v884
        %v893 = vcvt.s32.f32 %v885
        %v894 = vcvt.s32.f32 %v886
        %v895 = vcvt.s32.f32 %v887
        %v896 = vcvt.s32.f32 %v888
        %v897 = vcvt.s32.f32 %v889
        %v898 = vcvt.s32.f32 %v890
        %900 = vset.pattern.permute.xlu0 0
        %901 = vperm.xlu0 %900, %v891
        %v902 = vpop.permute.xlu0 %901
        %905 = vset.pattern.permute.xlu0 0
        %906 = vperm.xlu0 %905, %v892
        %v907 = vpop.permute.xlu0 %906
        %910 = vset.pattern.permute.xlu0 0
        %911 = vperm.xlu0 %910, %v893
        %v912 = vpop.permute.xlu0 %911
        %915 = vset.pattern.permute.xlu0 0
        %916 = vperm.xlu0 %915, %v894
        %v917 = vpop.permute.xlu0 %916
        %920 = vset.pattern.permute.xlu0 0
        %921 = vperm.xlu0 %920, %v895
        %v922 = vpop.permute.xlu0 %921
        %925 = vset.pattern.permute.xlu0 0
        %926 = vperm.xlu0 %925, %v896
        %v927 = vpop.permute.xlu0 %926
        %930 = vset.pattern.permute.xlu0 0
        %931 = vperm.xlu0 %930, %v897
        %v932 = vpop.permute.xlu0 %931
        %935 = vset.pattern.permute.xlu0 0
        %936 = vperm.xlu0 %935, %v898
        %v937 = vpop.permute.xlu0 %936
        %v939 = vlaneseq
        %v940 = vshrl.u32 %v939, 7
        %v941 = vsub.s32 1, %v940
        %v942 = vrot.slane %v790, %v941
        %v943 = vmul.f32 %v902, %v942
        %v944 = vmul.f32 %v907, %v942
        %v945 = vmul.f32 %v912, %v942
        %v946 = vmul.f32 %v917, %v942
        %v947 = vmul.f32 %v922, %v942
        %v948 = vmul.f32 %v927, %v942
        %v949 = vmul.f32 %v932, %v942
        %v950 = vmul.f32 %v937, %v942
        %v951 = vadd.f32 %v867, %v943
        %v952 = vadd.f32 %v868, %v944
        %v953 = vadd.f32 %v869, %v945
        %v954 = vadd.f32 %v870, %v946
        %v955 = vadd.f32 %v871, %v947
        %v956 = vadd.f32 %v872, %v948
        %v957 = vadd.f32 %v873, %v949
        %v958 = vadd.f32 %v874, %v950
        %vm959 = vcmp.eq.s32.totalorder %v451, 2
        %vm960 = vcmp.eq.s32.totalorder %v453, 2
        %vm961 = vcmp.eq.s32.totalorder %v455, 2
        %vm962 = vcmp.eq.s32.totalorder %v457, 2
        %vm963 = vcmp.eq.s32.totalorder %v459, 2
        %vm964 = vcmp.eq.s32.totalorder %v461, 2
        %vm965 = vcmp.eq.s32.totalorder %v463, 2
        %vm966 = vcmp.eq.s32.totalorder %v465, 2
        %v967 = vsel %vm959, 1, 0
        %v968 = vsel %vm960, 1, 0
        %v969 = vsel %vm961, 1, 0
        %v970 = vsel %vm962, 1, 0
        %v971 = vsel %vm963, 1, 0
        %v972 = vsel %vm964, 1, 0
        %v973 = vsel %vm965, 1, 0
        %v974 = vsel %vm966, 1, 0
        %v975 = vcvt.s32.f32 %v967
        %v976 = vcvt.s32.f32 %v968
        %v977 = vcvt.s32.f32 %v969
        %v978 = vcvt.s32.f32 %v970
        %v979 = vcvt.s32.f32 %v971
        %v980 = vcvt.s32.f32 %v972
        %v981 = vcvt.s32.f32 %v973
        %v982 = vcvt.s32.f32 %v974
        %984 = vset.pattern.permute.xlu0 0
        %985 = vperm.xlu0 %984, %v975
        %v986 = vpop.permute.xlu0 %985
        %989 = vset.pattern.permute.xlu0 0
        %990 = vperm.xlu0 %989, %v976
        %v991 = vpop.permute.xlu0 %990
        %994 = vset.pattern.permute.xlu0 0
        %995 = vperm.xlu0 %994, %v977
        %v996 = vpop.permute.xlu0 %995
        %999 = vset.pattern.permute.xlu0 0
        %1000 = vperm.xlu0 %999, %v978
        %v1001 = vpop.permute.xlu0 %1000
        %1004 = vset.pattern.permute.xlu0 0
        %1005 = vperm.xlu0 %1004, %v979
        %v1006 = vpop.permute.xlu0 %1005
        %1009 = vset.pattern.permute.xlu0 0
        %1010 = vperm.xlu0 %1009, %v980
        %v1011 = vpop.permute.xlu0 %1010
        %1014 = vset.pattern.permute.xlu0 0
        %1015 = vperm.xlu0 %1014, %v981
        %v1016 = vpop.permute.xlu0 %1015
        %1019 = vset.pattern.permute.xlu0 0
        %1020 = vperm.xlu0 %1019, %v982
        %v1021 = vpop.permute.xlu0 %1020
        %v1023 = vlaneseq
        %v1024 = vshrl.u32 %v1023, 7
        %v1025 = vsub.s32 2, %v1024
        %v1026 = vrot.slane %v790, %v1025
        %v1027 = vmul.f32 %v986, %v1026
        %v1028 = vmul.f32 %v991, %v1026
        %v1029 = vmul.f32 %v996, %v1026
        %v1030 = vmul.f32 %v1001, %v1026
        %v1031 = vmul.f32 %v1006, %v1026
        %v1032 = vmul.f32 %v1011, %v1026
        %v1033 = vmul.f32 %v1016, %v1026
        %v1034 = vmul.f32 %v1021, %v1026
        %v1035 = vadd.f32 %v951, %v1027
        %v1036 = vadd.f32 %v952, %v1028
        %v1037 = vadd.f32 %v953, %v1029
        %v1038 = vadd.f32 %v954, %v1030
        %v1039 = vadd.f32 %v955, %v1031
        %v1040 = vadd.f32 %v956, %v1032
        %v1041 = vadd.f32 %v957, %v1033
        %v1042 = vadd.f32 %v958, %v1034
        %vm1043 = vcmp.eq.s32.totalorder %v451, 3
        %vm1044 = vcmp.eq.s32.totalorder %v453, 3
        %vm1045 = vcmp.eq.s32.totalorder %v455, 3
        %vm1046 = vcmp.eq.s32.totalorder %v457, 3
        %vm1047 = vcmp.eq.s32.totalorder %v459, 3
        %vm1048 = vcmp.eq.s32.totalorder %v461, 3
        %vm1049 = vcmp.eq.s32.totalorder %v463, 3
        %vm1050 = vcmp.eq.s32.totalorder %v465, 3
        %v1051 = vsel %vm1043, 1, 0
        %v1052 = vsel %vm1044, 1, 0
        %v1053 = vsel %vm1045, 1, 0
        %v1054 = vsel %vm1046, 1, 0
        %v1055 = vsel %vm1047, 1, 0
        %v1056 = vsel %vm1048, 1, 0
        %v1057 = vsel %vm1049, 1, 0
        %v1058 = vsel %vm1050, 1, 0
        %v1059 = vcvt.s32.f32 %v1051
        %v1060 = vcvt.s32.f32 %v1052
        %v1061 = vcvt.s32.f32 %v1053
        %v1062 = vcvt.s32.f32 %v1054
        %v1063 = vcvt.s32.f32 %v1055
        %v1064 = vcvt.s32.f32 %v1056
        %v1065 = vcvt.s32.f32 %v1057
        %v1066 = vcvt.s32.f32 %v1058
        %1068 = vset.pattern.permute.xlu0 0
        %1069 = vperm.xlu0 %1068, %v1059
        %v1070 = vpop.permute.xlu0 %1069
        %1073 = vset.pattern.permute.xlu0 0
        %1074 = vperm.xlu0 %1073, %v1060
        %v1075 = vpop.permute.xlu0 %1074
        %1078 = vset.pattern.permute.xlu0 0
        %1079 = vperm.xlu0 %1078, %v1061
        %v1080 = vpop.permute.xlu0 %1079
        %1083 = vset.pattern.permute.xlu0 0
        %1084 = vperm.xlu0 %1083, %v1062
        %v1085 = vpop.permute.xlu0 %1084
        %1088 = vset.pattern.permute.xlu0 0
        %1089 = vperm.xlu0 %1088, %v1063
        %v1090 = vpop.permute.xlu0 %1089
        %1093 = vset.pattern.permute.xlu0 0
        %1094 = vperm.xlu0 %1093, %v1064
        %v1095 = vpop.permute.xlu0 %1094
        %1098 = vset.pattern.permute.xlu0 0
        %1099 = vperm.xlu0 %1098, %v1065
        %v1100 = vpop.permute.xlu0 %1099
        %1103 = vset.pattern.permute.xlu0 0
        %1104 = vperm.xlu0 %1103, %v1066
        %v1105 = vpop.permute.xlu0 %1104
        %v1107 = vlaneseq
        %v1108 = vshrl.u32 %v1107, 7
        %v1109 = vsub.s32 3, %v1108
        %v1110 = vrot.slane %v790, %v1109
        %v1111 = vmul.f32 %v1070, %v1110
        %v1112 = vmul.f32 %v1075, %v1110
        %v1113 = vmul.f32 %v1080, %v1110
        %v1114 = vmul.f32 %v1085, %v1110
        %v1115 = vmul.f32 %v1090, %v1110
        %v1116 = vmul.f32 %v1095, %v1110
        %v1117 = vmul.f32 %v1100, %v1110
        %v1118 = vmul.f32 %v1105, %v1110
        %v1119 = vadd.f32 %v1035, %v1111
        %v1120 = vadd.f32 %v1036, %v1112
        %v1121 = vadd.f32 %v1037, %v1113
        %v1122 = vadd.f32 %v1038, %v1114
        %v1123 = vadd.f32 %v1039, %v1115
        %v1124 = vadd.f32 %v1040, %v1116
        %v1125 = vadd.f32 %v1041, %v1117
        %v1126 = vadd.f32 %v1042, %v1118
        %vm1127 = vcmp.eq.s32.totalorder %v451, 4
        %vm1128 = vcmp.eq.s32.totalorder %v453, 4
        %vm1129 = vcmp.eq.s32.totalorder %v455, 4
        %vm1130 = vcmp.eq.s32.totalorder %v457, 4
        %vm1131 = vcmp.eq.s32.totalorder %v459, 4
        %vm1132 = vcmp.eq.s32.totalorder %v461, 4
        %vm1133 = vcmp.eq.s32.totalorder %v463, 4
        %vm1134 = vcmp.eq.s32.totalorder %v465, 4
        %v1135 = vsel %vm1127, 1, 0
        %v1136 = vsel %vm1128, 1, 0
        %v1137 = vsel %vm1129, 1, 0
        %v1138 = vsel %vm1130, 1, 0
        %v1139 = vsel %vm1131, 1, 0
        %v1140 = vsel %vm1132, 1, 0
        %v1141 = vsel %vm1133, 1, 0
        %v1142 = vsel %vm1134, 1, 0
        %v1143 = vcvt.s32.f32 %v1135
        %v1144 = vcvt.s32.f32 %v1136
        %v1145 = vcvt.s32.f32 %v1137
        %v1146 = vcvt.s32.f32 %v1138
        %v1147 = vcvt.s32.f32 %v1139
        %v1148 = vcvt.s32.f32 %v1140
        %v1149 = vcvt.s32.f32 %v1141
        %v1150 = vcvt.s32.f32 %v1142
        %1152 = vset.pattern.permute.xlu0 0
        %1153 = vperm.xlu0 %1152, %v1143
        %v1154 = vpop.permute.xlu0 %1153
        %1157 = vset.pattern.permute.xlu0 0
        %1158 = vperm.xlu0 %1157, %v1144
        %v1159 = vpop.permute.xlu0 %1158
        %1162 = vset.pattern.permute.xlu0 0
        %1163 = vperm.xlu0 %1162, %v1145
        %v1164 = vpop.permute.xlu0 %1163
        %1167 = vset.pattern.permute.xlu0 0
        %1168 = vperm.xlu0 %1167, %v1146
        %v1169 = vpop.permute.xlu0 %1168
        %1172 = vset.pattern.permute.xlu0 0
        %1173 = vperm.xlu0 %1172, %v1147
        %v1174 = vpop.permute.xlu0 %1173
        %1177 = vset.pattern.permute.xlu0 0
        %1178 = vperm.xlu0 %1177, %v1148
        %v1179 = vpop.permute.xlu0 %1178
        %1182 = vset.pattern.permute.xlu0 0
        %1183 = vperm.xlu0 %1182, %v1149
        %v1184 = vpop.permute.xlu0 %1183
        %1187 = vset.pattern.permute.xlu0 0
        %1188 = vperm.xlu0 %1187, %v1150
        %v1189 = vpop.permute.xlu0 %1188
        %v1191 = vlaneseq
        %v1192 = vshrl.u32 %v1191, 7
        %v1193 = vsub.s32 4, %v1192
        %v1194 = vrot.slane %v790, %v1193
        %v1195 = vmul.f32 %v1154, %v1194
        %v1196 = vmul.f32 %v1159, %v1194
        %v1197 = vmul.f32 %v1164, %v1194
        %v1198 = vmul.f32 %v1169, %v1194
        %v1199 = vmul.f32 %v1174, %v1194
        %v1200 = vmul.f32 %v1179, %v1194
        %v1201 = vmul.f32 %v1184, %v1194
        %v1202 = vmul.f32 %v1189, %v1194
        %v1203 = vadd.f32 %v1119, %v1195
        %v1204 = vadd.f32 %v1120, %v1196
        %v1205 = vadd.f32 %v1121, %v1197
        %v1206 = vadd.f32 %v1122, %v1198
        %v1207 = vadd.f32 %v1123, %v1199
        %v1208 = vadd.f32 %v1124, %v1200
        %v1209 = vadd.f32 %v1125, %v1201
        %v1210 = vadd.f32 %v1126, %v1202
        %vm1211 = vcmask 130048
        %1212 = vst.msk [vmem:[%s386] sm:$0xff] %vm1211, %v1203
        %1213 = vst.msk [vmem:[%s386 + $0x8] sm:$0xff] %vm1211, %v1204
        %1214 = vst.msk [vmem:[%s386 + $0x10] sm:$0xff] %vm1211, %v1205
        %1215 = vst.msk [vmem:[%s386 + $0x18] sm:$0xff] %vm1211, %v1206
        %1216 = vst.msk [vmem:[%s386 + $0x20] sm:$0xff] %vm1211, %v1207
        %1217 = vst.msk [vmem:[%s386 + $0x28] sm:$0xff] %vm1211, %v1208
        %1218 = vst.msk [vmem:[%s386 + $0x30] sm:$0xff] %vm1211, %v1209
        %1219 = vst.msk [vmem:[%s386 + $0x38] sm:$0xff] %vm1211, %v1210
        %v1220 = vld [vmem:[%s5] sm:$0x1]
        %vm1221 = vcmp.ge.s32.totalorder %v467, %v470
        %vm1222 = vcmp.ge.s32.totalorder %v467, %v473
        %vm1223 = vcmp.ge.s32.totalorder %v467, %v476
        %vm1224 = vcmp.ge.s32.totalorder %v467, %v479
        %vm1225 = vcmp.ge.s32.totalorder %v467, %v482
        %vm1226 = vcmp.ge.s32.totalorder %v467, %v485
        %vm1227 = vcmp.ge.s32.totalorder %v467, %v488
        %vm1228 = vcmp.ge.s32.totalorder %v467, %v491
        %vm1229 = vcmp.le.s32.totalorder %v467, %v518
        %vm1230 = vcmp.le.s32.totalorder %v467, %v521
        %vm1231 = vcmp.le.s32.totalorder %v467, %v524
        %vm1232 = vcmp.le.s32.totalorder %v467, %v527
        %vm1233 = vcmp.le.s32.totalorder %v467, %v530
        %vm1234 = vcmp.le.s32.totalorder %v467, %v533
        %vm1235 = vcmp.le.s32.totalorder %v467, %v536
        %vm1236 = vcmp.le.s32.totalorder %v467, %v539
        %vm1237 = vmand %vm1221, %vm1229
        %vm1238 = vmand %vm1222, %vm1230
        %vm1239 = vmand %vm1223, %vm1231
        %vm1240 = vmand %vm1224, %vm1232
        %vm1241 = vmand %vm1225, %vm1233
        %vm1242 = vmand %vm1226, %vm1234
        %vm1243 = vmand %vm1227, %vm1235
        %vm1244 = vmand %vm1228, %vm1236
        %v1245 = vadd.s32 %v394, 5
        %v1246 = vadd.s32 %v395, 5
        %v1247 = vadd.s32 %v396, 5
        %v1248 = vadd.s32 %v397, 5
        %v1249 = vadd.s32 %v398, 5
        %v1250 = vadd.s32 %v399, 5
        %v1251 = vadd.s32 %v400, 5
        %v1252 = vadd.s32 %v401, 5
        %1253 = vset.pattern.permute.xlu0 0
        %1254 = vperm.xlu0 %1253, %v1245
        %v1255 = vpop.permute.xlu0 %1254
        %1256 = vset.pattern.permute.xlu0 0
        %1257 = vperm.xlu0 %1256, %v1246
        %v1258 = vpop.permute.xlu0 %1257
        %1259 = vset.pattern.permute.xlu0 0
        %1260 = vperm.xlu0 %1259, %v1247
        %v1261 = vpop.permute.xlu0 %1260
        %1262 = vset.pattern.permute.xlu0 0
        %1263 = vperm.xlu0 %1262, %v1248
        %v1264 = vpop.permute.xlu0 %1263
        %1265 = vset.pattern.permute.xlu0 0
        %1266 = vperm.xlu0 %1265, %v1249
        %v1267 = vpop.permute.xlu0 %1266
        %1268 = vset.pattern.permute.xlu0 0
        %1269 = vperm.xlu0 %1268, %v1250
        %v1270 = vpop.permute.xlu0 %1269
        %1271 = vset.pattern.permute.xlu0 0
        %1272 = vperm.xlu0 %1271, %v1251
        %v1273 = vpop.permute.xlu0 %1272
        %1274 = vset.pattern.permute.xlu0 0
        %1275 = vperm.xlu0 %1274, %v1252
        %v1276 = vpop.permute.xlu0 %1275
        %vm1277 = vcmp.lt.s32.totalorder %v467, %v1255
        %vm1278 = vcmp.lt.s32.totalorder %v467, %v1258
        %vm1279 = vcmp.lt.s32.totalorder %v467, %v1261
        %vm1280 = vcmp.lt.s32.totalorder %v467, %v1264
        %vm1281 = vcmp.lt.s32.totalorder %v467, %v1267
        %vm1282 = vcmp.lt.s32.totalorder %v467, %v1270
        %vm1283 = vcmp.lt.s32.totalorder %v467, %v1273
        %vm1284 = vcmp.lt.s32.totalorder %v467, %v1276
        %vm1285 = vmand %vm1237, %vm1277
        %vm1286 = vmand %vm1238, %vm1278
        %vm1287 = vmand %vm1239, %vm1279
        %vm1288 = vmand %vm1240, %vm1280
        %vm1289 = vmand %vm1241, %vm1281
        %vm1290 = vmand %vm1242, %vm1282
        %vm1291 = vmand %vm1243, %vm1283
        %vm1292 = vmand %vm1244, %vm1284
        %v1294 = vlaneseq
        %v1295 = vshrl.u32 %v1294, 7
        %v1296 = vsub.s32 0, %v1295
        %v1297 = vrot.slane %v1220, %v1296
        %v1299 = vsel %vm1285, %v1297, -inf
        %v1300 = vsel %vm1286, %v1297, -inf
        %v1301 = vsel %vm1287, %v1297, -inf
        %v1302 = vsel %vm1288, %v1297, -inf
        %v1303 = vsel %vm1289, %v1297, -inf
        %v1304 = vsel %vm1290, %v1297, -inf
        %v1305 = vsel %vm1291, %v1297, -inf
        %v1306 = vsel %vm1292, %v1297, -inf
        %1307 = vmax.xlane.f32.xlu0 %v1299
        %v1308 = vpop.xlane.xlu0 %1307
        %1309 = vmax.xlane.f32.xlu0 %v1300
        %v1310 = vpop.xlane.xlu0 %1309
        %1311 = vmax.xlane.f32.xlu0 %v1301
        %v1312 = vpop.xlane.xlu0 %1311
        %1313 = vmax.xlane.f32.xlu0 %v1302
        %v1314 = vpop.xlane.xlu0 %1313
        %1315 = vmax.xlane.f32.xlu0 %v1303
        %v1316 = vpop.xlane.xlu0 %1315
        %1317 = vmax.xlane.f32.xlu0 %v1304
        %v1318 = vpop.xlane.xlu0 %1317
        %1319 = vmax.xlane.f32.xlu0 %v1305
        %v1320 = vpop.xlane.xlu0 %1319
        %1321 = vmax.xlane.f32.xlu0 %v1306
        %v1322 = vpop.xlane.xlu0 %1321
        %v1323 = vsub.f32 %v1299, %v1308
        %v1324 = vsub.f32 %v1300, %v1310
        %v1325 = vsub.f32 %v1301, %v1312
        %v1326 = vsub.f32 %v1302, %v1314
        %v1327 = vsub.f32 %v1303, %v1316
        %v1328 = vsub.f32 %v1304, %v1318
        %v1329 = vsub.f32 %v1305, %v1320
        %v1330 = vsub.f32 %v1306, %v1322
        %v1331 = vmul.f32 %v1323, 1.442695
        %v1332 = vpow.pop %v1331
        %v1333 = vmul.f32 %v1324, 1.442695
        %v1334 = vpow.pop %v1333
        %v1335 = vmul.f32 %v1325, 1.442695
        %v1336 = vpow.pop %v1335
        %v1337 = vmul.f32 %v1326, 1.442695
        %v1338 = vpow.pop %v1337
        %v1339 = vmul.f32 %v1327, 1.442695
        %v1340 = vpow.pop %v1339
        %v1341 = vmul.f32 %v1328, 1.442695
        %v1342 = vpow.pop %v1341
        %v1343 = vmul.f32 %v1329, 1.442695
        %v1344 = vpow.pop %v1343
        %v1345 = vmul.f32 %v1330, 1.442695
        %v1346 = vpow.pop %v1345
        %1347 = vadd.xlane.f32.xlu0 %v1332
        %v1348 = vpop.xlane.xlu0 %1347
        %1349 = vadd.xlane.f32.xlu0 %v1334
        %v1350 = vpop.xlane.xlu0 %1349
        %1351 = vadd.xlane.f32.xlu0 %v1336
        %v1352 = vpop.xlane.xlu0 %1351
        %1353 = vadd.xlane.f32.xlu0 %v1338
        %v1354 = vpop.xlane.xlu0 %1353
        %1355 = vadd.xlane.f32.xlu0 %v1340
        %v1356 = vpop.xlane.xlu0 %1355
        %1357 = vadd.xlane.f32.xlu0 %v1342
        %v1358 = vpop.xlane.xlu0 %1357
        %1359 = vadd.xlane.f32.xlu0 %v1344
        %v1360 = vpop.xlane.xlu0 %1359
        %1361 = vadd.xlane.f32.xlu0 %v1346
        %v1362 = vpop.xlane.xlu0 %1361
        %v1363 = vrcp.pop %v1348
        %v1364 = vmul.f32 %v1332, %v1363
        %v1365 = vrcp.pop %v1350
        %v1366 = vmul.f32 %v1334, %v1365
        %v1367 = vrcp.pop %v1352
        %v1368 = vmul.f32 %v1336, %v1367
        %v1369 = vrcp.pop %v1354
        %v1370 = vmul.f32 %v1338, %v1369
        %v1371 = vrcp.pop %v1356
        %v1372 = vmul.f32 %v1340, %v1371
        %v1373 = vrcp.pop %v1358
        %v1374 = vmul.f32 %v1342, %v1373
        %v1375 = vrcp.pop %v1360
        %v1376 = vmul.f32 %v1344, %v1375
        %v1377 = vrcp.pop %v1362
        %v1378 = vmul.f32 %v1346, %v1377
        %v1379 = vld [vmem:[%s2] sm:$0xff]
        %v1380 = vld [vmem:[%s2 + $0x8] sm:$0xff]
        %v1381 = vld [vmem:[%s2 + $0x10] sm:$0xff]
        %v1382 = vld [vmem:[%s2 + $0x18] sm:$0xff]
        %v1383 = vld [vmem:[%s2 + $0x20] sm:$0xff]
        %v1384 = vld [vmem:[%s2 + $0x28] sm:$0xff]
        %v1385 = vld [vmem:[%s2 + $0x30] sm:$0xff]
        %v1386 = vld [vmem:[%s2 + $0x38] sm:$0xff]
        %v1387 = vld [vmem:[%s2 + $0x40] sm:$0xff]
        %v1388 = vld [vmem:[%s2 + $0x48] sm:$0xff]
        %v1389 = vld [vmem:[%s2 + $0x50] sm:$0xff]
        %v1390 = vld [vmem:[%s2 + $0x58] sm:$0xff]
        %v1391 = vld [vmem:[%s2 + $0x60] sm:$0xff]
        %v1392 = vld [vmem:[%s2 + $0x68] sm:$0xff]
        %v1393 = vld [vmem:[%s2 + $0x70] sm:$0xff]
        %v1394 = vld [vmem:[%s2 + $0x78] sm:$0xff]
        %1395 = vmatprep.subr.mxu0 0.0
        %1396 = vmatpush1.msra.mxu0 %v1379
        %1397 = vmatprep.subr.mxu0 0.0
        %1398 = vmatpush1.msra.mxu0 %v1380
        %1399 = vmatprep.subr.mxu0 0.0
        %1400 = vmatpush1.msra.mxu0 %v1381
        %1401 = vmatprep.subr.mxu0 0.0
        %1402 = vmatpush1.msra.mxu0 %v1382
        %1403 = vmatprep.subr.mxu0 0.0
        %1404 = vmatpush1.msra.mxu0 %v1383
        %1405 = vmatprep.subr.mxu0 0.0
        %1406 = vmatpush1.msra.mxu0 %v1384
        %1407 = vmatprep.subr.mxu0 0.0
        %1408 = vmatpush1.msra.mxu0 %v1385
        %1409 = vmatprep.subr.mxu0 0.0
        %1410 = vmatpush1.msra.mxu0 %v1386
        %1411 = vmatprep.subr.mxu0 0.0
        %1412 = vmatpush1.msra.mxu0 %v1387
        %1413 = vmatprep.subr.mxu0 0.0
        %1414 = vmatpush1.msra.mxu0 %v1388
        %1415 = vmatprep.subr.mxu0 0.0
        %1416 = vmatpush1.msra.mxu0 %v1389
        %1417 = vmatprep.subr.mxu0 0.0
        %1418 = vmatpush1.msra.mxu0 %v1390
        %1419 = vmatprep.subr.mxu0 0.0
        %1420 = vmatpush1.msra.mxu0 %v1391
        %1421 = vmatprep.subr.mxu0 0.0
        %1422 = vmatpush1.msra.mxu0 %v1392
        %1423 = vmatprep.subr.mxu0 0.0
        %1424 = vmatpush1.msra.mxu0 %v1393
        %1425 = vmatprep.subr.mxu0 0.0
        %1426 = vmatpush1.msra.mxu0 %v1394
        %1427 = vmatprep.subr.mxu0 0.0
        %1428 = vmatpush1.msra.mxu0 0.0
        %1429 = vmatprep.subr.mxu0 0.0
        %1430 = vmatpush1.msra.mxu0 0.0
        %1431 = vmatprep.subr.mxu0 0.0
        %1432 = vmatpush1.msra.mxu0 0.0
        %1433 = vmatprep.subr.mxu0 0.0
        %1434 = vmatpush1.msra.mxu0 0.0
        %1435 = vmatprep.subr.mxu0 0.0
        %1436 = vmatpush1.msra.mxu0 0.0
        %1437 = vmatprep.subr.mxu0 0.0
        %1438 = vmatpush1.msra.mxu0 0.0
        %1439 = vmatprep.subr.mxu0 0.0
        %1440 = vmatpush1.msra.mxu0 0.0
        %1441 = vmatprep.subr.mxu0 0.0
        %1442 = vmatpush1.msra.mxu0 0.0
        %1443 = vmatprep.subr.mxu0 0.0
        %1444 = vmatpush1.msra.mxu0 0.0
        %1445 = vmatprep.subr.mxu0 0.0
        %1446 = vmatpush1.msra.mxu0 0.0
        %1447 = vmatprep.subr.mxu0 0.0
        %1448 = vmatpush1.msra.mxu0 0.0
        %1449 = vmatprep.subr.mxu0 0.0
        %1450 = vmatpush1.msra.mxu0 0.0
        %1451 = vmatprep.subr.mxu0 0.0
        %1452 = vmatpush1.msra.mxu0 0.0
        %1453 = vmatprep.subr.mxu0 0.0
        %1454 = vmatpush1.msra.mxu0 0.0
        %1455 = vmatprep.subr.mxu0 0.0
        %1456 = vmatpush1.msra.mxu0 0.0
        %1457 = vmatprep.subr.mxu0 0.0
        %1458 = vmatpush1.msra.mxu0 0.0
        %1459 = vmatprep.mubr.f32.mxu0 0.0
        %1460 = vmatmul.mubr.f32.gmra.mrb[0].mxu0 %v1364
        %v1461 = vpop.f32.mrb[0].mxu0
        %v1462 = vadd.f32 0.0, %v1461
        %v1463 = vpop.f32.mrb[0].mxu0
        %1464 = vmatprep.mubr.f32.mxu0 0.0
        %1465 = vmatmul.mubr.f32.gmra.mrb[0].mxu0 %v1366
        %v1466 = vpop.f32.mrb[0].mxu0
        %v1467 = vadd.f32 0.0, %v1466
        %v1468 = vpop.f32.mrb[0].mxu0
        %1469 = vmatprep.mubr.f32.mxu0 0.0
        %1470 = vmatmul.mubr.f32.gmra.mrb[0].mxu0 %v1368
        %v1471 = vpop.f32.mrb[0].mxu0
        %v1472 = vadd.f32 0.0, %v1471
        %v1473 = vpop.f32.mrb[0].mxu0
        %1474 = vmatprep.mubr.f32.mxu0 0.0
        %1475 = vmatmul.mubr.f32.gmra.mrb[0].mxu0 %v1370
        %v1476 = vpop.f32.mrb[0].mxu0
        %v1477 = vadd.f32 0.0, %v1476
        %v1478 = vpop.f32.mrb[0].mxu0
        %1479 = vmatprep.mubr.f32.mxu0 0.0
        %1480 = vmatmul.mubr.f32.gmra.mrb[0].mxu0 %v1372
        %v1481 = vpop.f32.mrb[0].mxu0
        %v1482 = vadd.f32 0.0, %v1481
        %v1483 = vpop.f32.mrb[0].mxu0
        %1484 = vmatprep.mubr.f32.mxu0 0.0
        %1485 = vmatmul.mubr.f32.gmra.mrb[0].mxu0 %v1374
        %v1486 = vpop.f32.mrb[0].mxu0
        %v1487 = vadd.f32 0.0, %v1486
        %v1488 = vpop.f32.mrb[0].mxu0
        %1489 = vmatprep.mubr.f32.mxu0 0.0
        %1490 = vmatmul.mubr.f32.gmra.mrb[0].mxu0 %v1376
        %v1491 = vpop.f32.mrb[0].mxu0
        %v1492 = vadd.f32 0.0, %v1491
        %v1493 = vpop.f32.mrb[0].mxu0
        %1494 = vmatprep.mubr.f32.mxu0 0.0
        %1495 = vmatmul.mubr.f32.gmra.mrb[0].mxu0 %v1378
        %v1496 = vpop.f32.mrb[0].mxu0
        %v1497 = vadd.f32 0.0, %v1496
        %v1498 = vpop.f32.mrb[0].mxu0
        %1499 = vdwg.mxu0
        %vm1500 = vcmask 523264
        %1501 = vst.msk [vmem:[%s392] sm:$0xff] %vm1500, %v1462
        %1502 = vst.msk [vmem:[%s392 + $0x8] sm:$0xff] %vm1500, %v1467
        %1503 = vst.msk [vmem:[%s392 + $0x10] sm:$0xff] %vm1500, %v1472
        %1504 = vst.msk [vmem:[%s392 + $0x18] sm:$0xff] %vm1500, %v1477
        %1505 = vst.msk [vmem:[%s392 + $0x20] sm:$0xff] %vm1500, %v1482
        %1506 = vst.msk [vmem:[%s392 + $0x28] sm:$0xff] %vm1500, %v1487
        %1507 = vst.msk [vmem:[%s392 + $0x30] sm:$0xff] %vm1500, %v1492
        %1508 = vst.msk [vmem:[%s392 + $0x38] sm:$0xff] %vm1500, %v1497
        %s1509 = sand.u32 %s171, 1
        %s1510 = scalar_lea.sflag [#allocation3], %s1509
        %s1511 = sand.u32 %s171, 1
        %s1512 = smul.addr %s1511, 64
        %s1513 = scalar_lea.vmem [#allocation2], %s1512
        %s1514 = sand.u32 %s197, 1
        %s1515 = scalar_lea.sflag [#allocation5], %s1514
        %s1516 = sand.u32 %s197, 1
        %s1517 = smul.addr %s1516, 64
        %s1518 = scalar_lea.vmem [#allocation4], %s1517
        %s1519 = smul.u32 8, %s27
        %p1520 = scmp.lt.s32.totalorder %s1519, 31
        %s1521 = scalar_select %p1520, %s1519, 31
        %s1522 = smul.addr %s1521, 8
        %s1523 = scalar_lea.vmem %s8, %s1522
        %s1524 = smul.u32 8, %s27
        %p1525 = scmp.lt.s32.totalorder %s1524, 31
        %s1526 = scalar_select %p1525, %s1524, 31
        %s1527 = smul.addr %s1526, 8
        %s1528 = scalar_lea.vmem %s9, %s1527
        // Predicated region
        $region45: #{tpu_custom_call.1} parent=43 // pred_check
          %p1529 = pneg %p181
        $region46: #{tpu_custom_call.1} parent=43 // pred_check_branch
          %1531 = sbr.rel (%p1529) target = $region48
        $region47: #{tpu_custom_call.1} parent=43 // pred_region
          %s1532 = smul.u32 8, %s27
          %s1534 = ssub.s32 1024, 1024
          %1535 = vsyncadd %s1510, %s1534
          %s1536 = smul.addr %s1532, 128
          %s1537 = scalar_lea.hbm %s6, %s1536
          %s1538 = sshll.u32 %s1513, 4
          %s1539 = int_to_ptr.vmem [resolvable:$true] %s1538
          %1544 = dma.vmem_to_hbm [thread:$0]  %s1539, 1024, %s1537, %s1510, 128, 128, 8
        $region48: #{tpu_custom_call.1} parent=43 // pred_fallthru
          _
        // Predicated region
        $region49: #{tpu_custom_call.1} parent=43 // pred_check
          %p1545 = pneg %p207
        $region50: #{tpu_custom_call.1} parent=43 // pred_check_branch
          %1547 = sbr.rel (%p1545) target = $region52
        $region51: #{tpu_custom_call.1} parent=43 // pred_region
          %s1548 = smul.u32 8, %s27
          %s1550 = ssub.s32 1024, 1024
          %1551 = vsyncadd %s1515, %s1550
          %s1552 = smul.addr %s1548, 128
          %s1553 = scalar_lea.hbm %s7, %s1552
          %s1554 = sshll.u32 %s1518, 4
          %s1555 = int_to_ptr.vmem [resolvable:$true] %s1554
          %1560 = dma.vmem_to_hbm [thread:$0]  %s1555, 1024, %s1553, %s1515, 128, 128, 8
        $region52: #{tpu_custom_call.1} parent=43 // pred_fallthru
          _
        // Predicated region
        $region53: #{tpu_custom_call.1} parent=43 // pred_check
          %p1561 = pneg %p233
        $region54: #{tpu_custom_call.1} parent=43 // pred_check_branch
          %1563 = sbr.rel (%p1561) target = $region56
        $region55: #{tpu_custom_call.1} parent=43 // pred_region
          %s1564 = smul.u32 8, %s27
        $region56: #{tpu_custom_call.1} parent=43 // pred_fallthru
          _
        // Predicated region
        $region57: #{tpu_custom_call.1} parent=43 // pred_check
          %p1565 = pneg %p259
        $region58: #{tpu_custom_call.1} parent=43 // pred_check_branch
          %1567 = sbr.rel (%p1565) target = $region60
        $region59: #{tpu_custom_call.1} parent=43 // pred_region
          %s1568 = smul.u32 8, %s27
        $region60: #{tpu_custom_call.1} parent=43 // pred_fallthru
          _
      $region44: #{tpu_custom_call.1} parent=5 // pred_fallthru
        _
      %p1569 = scmp.le.s32.totalorder 2, %s22
      // Predicated region
      $region61: #{tpu_custom_call.1} parent=5 // pred_check
        %p1570 = pneg %p1569
      $region62: #{tpu_custom_call.1} parent=5 // pred_check_branch
        %1572 = sbr.rel (%p1570) target = $region64
      $region63: #{tpu_custom_call.1} parent=5 // pred_region
        %s1573 = ssub.s32 %s22, 2
        // Predicated region
        $region65: #{tpu_custom_call.1} parent=63 // pred_check
          %p1574 = pneg %p187
        $region66: #{tpu_custom_call.1} parent=63 // pred_check_branch
          %1576 = sbr.rel (%p1574) target = $region68
        $region67: #{tpu_custom_call.1} parent=63 // pred_region
          %s1577 = sand.u32 %s172, 1
          %s1578 = scalar_lea.sflag [#allocation3], %s1577
          %s1579 = sand.u32 %s172, 1
          %s1580 = smul.addr %s1579, 64
          %s1581 = scalar_lea.vmem [#allocation2], %s1580
          %1582 = dma.done %s1578, 1024
        $region68: #{tpu_custom_call.1} parent=63 // pred_fallthru
          _
        // Predicated region
        $region69: #{tpu_custom_call.1} parent=63 // pred_check
          %p1583 = pneg %p213
        $region70: #{tpu_custom_call.1} parent=63 // pred_check_branch
          %1585 = sbr.rel (%p1583) target = $region72
        $region71: #{tpu_custom_call.1} parent=63 // pred_region
          %s1586 = sand.u32 %s198, 1
          %s1587 = scalar_lea.sflag [#allocation5], %s1586
          %s1588 = sand.u32 %s198, 1
          %s1589 = smul.addr %s1588, 64
          %s1590 = scalar_lea.vmem [#allocation4], %s1589
          %1591 = dma.done %s1587, 1024
        $region72: #{tpu_custom_call.1} parent=63 // pred_fallthru
          _
        // Predicated region
        $region73: #{tpu_custom_call.1} parent=63 // pred_check
          %p1592 = pneg %p239
        $region74: #{tpu_custom_call.1} parent=63 // pred_check_branch
          %1594 = sbr.rel (%p1592) target = $region76
        $region75: #{tpu_custom_call.1} parent=63 // pred_region
          %s1595 = smul.u32 8, %s28
          %p1596 = scmp.lt.s32.totalorder %s1595, 31
          %s1597 = scalar_select %p1596, %s1595, 31
          %s1598 = smul.addr %s1597, 8
          %s1599 = scalar_lea.vmem %s8, %s1598
        $region76: #{tpu_custom_call.1} parent=63 // pred_fallthru
          _
        // Predicated region
        $region77: #{tpu_custom_call.1} parent=63 // pred_check
          %p1600 = pneg %p265
        $region78: #{tpu_custom_call.1} parent=63 // pred_check_branch
          %1602 = sbr.rel (%p1600) target = $region80
        $region79: #{tpu_custom_call.1} parent=63 // pred_region
          %s1603 = smul.u32 8, %s28
          %p1604 = scmp.lt.s32.totalorder %s1603, 31
          %s1605 = scalar_select %p1604, %s1603, 31
          %s1606 = smul.addr %s1605, 8
          %s1607 = scalar_lea.vmem %s9, %s1606
        $region80: #{tpu_custom_call.1} parent=63 // pred_fallthru
          _
      $region64: #{tpu_custom_call.1} parent=5 // pred_fallthru
        _
    $region6: #{tpu_custom_call.1} parent=1 // loop_footer
      %s26 = sadd.s32 1, %s22
    $region7: #{tpu_custom_call.1} parent=1 // loop_footer_branch
      %21 = sbr.rel target = $region3
    $region8: #{tpu_custom_call.1} parent=1 // loop_exit
      _
    %1608 = vsyncpa [#allocation3], 1
    %s1609 = scalar_lea.sflag [#allocation3], 1
    %1610 = vsyncpa %s1609, 1
    %1611 = vsyncpa [#allocation5], 1
    %s1612 = scalar_lea.sflag [#allocation5], 1
    %1613 = vsyncpa %s1612, 1

</llo_original>
